<compile_context>
chip_gen: v7x
topology: tpu7x:2x2x1
jax: 0.10.0
libtpu: 0.0.40
codegen_flags: <defaults>
</compile_context>

<pallas_src>
import math

import jax
import jax.numpy as jnp
from jax.experimental import pallas as pl
from jax.experimental.pallas import tpu as pltpu


def linear_clamp_kernel(x_ref, wt_ref, o_ref):
    # x_ref: (M, K)  wt_ref: (K, tn)  o_ref: (M, tn)
    y = jnp.dot(x_ref[...], wt_ref[...], preferred_element_type=jnp.float32)
    # clamp_max(0.9) then clamp_max(0.7)  ==  min(y, 0.7)
    o_ref[...] = jnp.minimum(y, 0.7).astype(o_ref.dtype)


def linear_clamp(x, w, *, num_blocks=2):
    """x: (..., K) float32, w: (N, K) float32 -> (..., N) float32."""
    orig_shape = x.shape
    K = orig_shape[-1]
    M = math.prod(orig_shape[:-1])
    N = w.shape[0]
    assert w.shape[1] == K
    assert N % num_blocks == 0
    tn = N // num_blocks
    assert tn % 128 == 0, "output block must stay lane-dense"
    assert M % 8 == 0, "M must be sublane-aligned for this simple kernel"

    x2 = x.reshape(M, K)
    wt = w.T  # one-time wrapper-side transpose: kernel sees (K, N) directly

    cost = pl.CostEstimate(
        flops=2 * M * K * N,
        transcendentals=0,
        bytes_accessed=(M * K + K * N + M * N) * 4,
    )

    out = pl.pallas_call(
        linear_clamp_kernel,
        out_shape=jax.ShapeDtypeStruct((M, N), jnp.float32),
        grid_spec=pltpu.PrefetchScalarGridSpec(
            num_scalar_prefetch=0,
            grid=(num_blocks,),
            in_specs=[
                pl.BlockSpec((M, K), lambda j: (0, 0)),
                pl.BlockSpec((K, tn), lambda j: (0, j)),
            ],
            out_specs=pl.BlockSpec((M, tn), lambda j: (0, j)),
        ),
        compiler_params=pltpu.CompilerParams(
            dimension_semantics=("parallel",)
        ),
        cost_estimate=cost,
    )(x2, wt)

    return out.reshape(*orig_shape[:-1], N)


if __name__ == "__main__":
    key = jax.random.PRNGKey(0)
    kx, kw = jax.random.split(key)

    # Shapes consistent with the module: x1 ~ (1, 3, 64, 64)
    x1 = jax.random.normal(kx, (1, 3, 64, 64), dtype=jnp.float32)
    # Linear weight: out_features=3072, in_features=64
    w = jax.random.normal(kw, (3072, 64), dtype=jnp.float32) * 0.02

    out = linear_clamp(x1, w)
    out = jax.block_until_ready(out)

    # Lightweight sanity check against plain-JAX reference.
    ref = jnp.minimum(jnp.minimum(jnp.einsum("bchw,nw->bchn", x1, w), 0.9), 0.7)
    assert out.shape == (1, 3, 64, 3072)
    assert jnp.allclose(out, ref, atol=1e-4, rtol=1e-4)

    print("KERNEL_OK")
</pallas_src>

<mosaic_0001>
module attributes {stable_mosaic.version = 11 : i64} {
  func.func @linear_clamp_kernel(%arg0: i32, %arg1: memref<192x64xf32, #tpu.memory_space<vmem>>, %arg2: memref<64x1536xf32, #tpu.memory_space<vmem>>, %arg3: memref<192x1536xf32, #tpu.memory_space<vmem>>) attributes {dimension_semantics = [#tpu.dimension_semantics<parallel>], iteration_bounds = array<i64: 2>, scalar_prefetch = 0 : i64, scratch_operands = 0 : i64, tpu.core_type = #tpu.core_type<tc>, window_params = [{pipeline_mode = #tpu.pipeline_mode<synchronous>, transform_indices = @transform_0, window_bounds = array<i64: 192, 64>}, {transform_indices = @transform_1, window_bounds = array<i64: 64, 1536>}, {transform_indices = @transform_2, window_bounds = array<i64: 192, 1536>}]} {
    %c0 = arith.constant 0 : index
    %c0_0 = arith.constant 0 : index
    %0 = vector.load %arg1[%c0, %c0_0] : memref<192x64xf32, #tpu.memory_space<vmem>>, vector<192x64xf32>
    %c0_1 = arith.constant 0 : index
    %c0_2 = arith.constant 0 : index
    %1 = vector.load %arg2[%c0_1, %c0_2] : memref<64x1536xf32, #tpu.memory_space<vmem>>, vector<64x1536xf32>
    %cst = arith.constant dense<0.000000e+00> : vector<192x1536xf32>
    %2 = tpu.matmul %0, %1, %cst {dimension_numbers = #tpu.dot_dimension_numbers<[1], [0], [0], [1], [0, 0, 1, 1], [], []>} : vector<192x64xf32>, vector<64x1536xf32>, vector<192x1536xf32> -> vector<192x1536xf32>
    %cst_3 = arith.constant 0.699999988 : f32
    %3 = vector.broadcast %cst_3 : f32 to vector<192x1536xf32>
    %4 = arith.minimumf %2, %3 : vector<192x1536xf32>
    %c0_4 = arith.constant 0 : index
    %c0_5 = arith.constant 0 : index
    %5 = vector.load %arg3[%c0_4, %c0_5] : memref<192x1536xf32, #tpu.memory_space<vmem>>, vector<192x1536xf32>
    tpu.vector_store %arg3[%c0_4, %c0_5], %4 {strides = array<i32>} : memref<192x1536xf32, #tpu.memory_space<vmem>>, vector<192x1536xf32>,
    return
  }
  func.func @transform_0(%arg0: i32) -> (i32, i32) {
    %c0_i32 = arith.constant 0 : i32
    %c0_i32_0 = arith.constant 0 : i32
    %c0_i32_1 = arith.constant 0 : i32
    return %c0_i32, %c0_i32_0 : i32, i32
  }
  func.func @transform_1(%arg0: i32) -> (i32, i32) {
    %c0_i32 = arith.constant 0 : i32
    %c0_i32_0 = arith.constant 0 : i32
    return %c0_i32, %arg0 : i32, i32
  }
  func.func @transform_2(%arg0: i32) -> (i32, i32) {
    %c0_i32 = arith.constant 0 : i32
    %c0_i32_0 = arith.constant 0 : i32
    return %c0_i32, %arg0 : i32, i32
  }
}

</mosaic_0001>

<llo_original>
// kernel: tpu_custom_call.1
$region0: #{tpu_custom_call.1}
  #allocation0 [shape = 'u32[]', space=smem, size = 0x4, offset = 0x4, fixed_abs, tag = 'smem constant byte address 0x4 - core index']
  #allocation1 [shape = 'u32[144,128]{1,0:T(1,128)}', space=vmem, size = 0x12000, scoped, tag = 'internal scratch']
  %s0 = inlined_call_operand.vmem [shape: f32[192,64], index: 0, kind: input, shape index: {}]
  %s1 = inlined_call_operand.hbm [shape: f32[64,3072], index: 1, kind: input, shape index: {}]
  %s2 = inlined_call_operand.hbm [shape: f32[192,3072], index: 2, kind: output, shape index: {}]
  %s3 = sld [smem:[#allocation0]]
  $region45: #{tpu_custom_call.1} parent=0
    _
  %s5 = ssub.s32 1, %s3
  %s6 = scalar_select 0, %s5, %s3
  $region1: #{tpu_custom_call.1} parent=0
    #allocation2 [shape = 'u8[786432]{0}', space=vmem, size = 0xc0000, scoped, tag = 'input window, operand 1']
    #allocation3 [shape = 's32[2]{0}', space=sflag, size = 0x8, scoped, tag = 'scoped memory for tpu_custom_call.1']
    #allocation4 [shape = 's32[2]{0}', space=sflag, size = 0x8, scoped, tag = 'scoped memory for tpu_custom_call.1']
    #allocation5 [shape = 'u8[2359296]{0}', space=vmem, size = 0x240000, scoped, tag = 'output window, operand 0']
    %7 = vsyncpa [#allocation3], 0
    %s8 = scalar_lea.sflag [#allocation3], 1
    %9 = vsyncpa %s8, 0
    %10 = vsyncpa [#allocation4], 0
    %s11 = scalar_lea.sflag [#allocation4], 1
    %12 = vsyncpa %s11, 0
    loop: start=0, step=1, limit=4
    $region2: #{tpu_custom_call.1} parent=1 // loop_pre_header
      _
    $region3: #{tpu_custom_call.1} parent=1 // loop_header
      %s14 = sphi 0, %s18
      %p15 = scmp.ge.s32.totalorder %s14, 4
      %s22 = sphi 0, %s22
      %s24 = sphi 0, %s22
      %s25 = sphi 0, %s24
      %s39 = sphi 0, %s25
      %s45 = sphi 0, %s47
      %s48 = sphi 0, %s45
      %s49 = sphi 0, %s48
      %s65 = sphi 0, %s49
      %s71 = sphi 0, %s73
      %s74 = sphi 0, %s71
      %s75 = sphi 0, %s74
      %s91 = sphi 0, %s75
    $region4: #{tpu_custom_call.1} parent=1 // loop_header_branch
      %17 = sbr.rel (%p15) target = $region8
    $region5: #{tpu_custom_call.1} parent=1 // loop_body
      %s19 = ssub.s32 %s14, 1
      %s20 = ssub.s32 %s14, 2
      %s21 = sadd.s32 %s14, 1
      %s23 = sadd.s32 %s22, 1
      %p26 = scmp.eq.s32.totalorder %s14, 1
      %p27 = scmp.ne.s32.totalorder %s22, %s24
      %p28 = scmp.eq.s32.totalorder %s14, 0
      %p29 = por %p27, %p28
      %p30 = scmp.ne.s32.totalorder %s22, %s24
      %p31 = scmp.eq.s32.totalorder %s19, 1
      %p32 = por %p30, %p31
      %p33 = scmp.ne.s32.totalorder %s24, %s25
      %p34 = scmp.eq.s32.totalorder %s19, 0
      %p35 = por %p33, %p34
      %p36 = scmp.ne.s32.totalorder %s24, %s25
      %p37 = scmp.eq.s32.totalorder %s20, 1
      %p38 = por %p36, %p37
      %p40 = scmp.ne.s32.totalorder %s25, %s39
      %p41 = scmp.eq.s32.totalorder %s20, 0
      %p42 = por %p40, %p41
      %s43 = ssub.s32 %s14, %s21
      %p44 = scmp.eq.s32.totalorder %s43, 0
      %s46 = sadd.s32 %s45, 1
      %s47 = scalar_select %p44, %s45, %s46
      %p50 = pneg %p44
      %p51 = scmp.eq.s32.totalorder %s14, 1
      %p52 = por %p50, %p51
      %p53 = scmp.ne.s32.totalorder %s45, %s48
      %p54 = scmp.eq.s32.totalorder %s14, 0
      %p55 = por %p53, %p54
      %p56 = scmp.ne.s32.totalorder %s45, %s48
      %p57 = scmp.eq.s32.totalorder %s19, 1
      %p58 = por %p56, %p57
      %p59 = scmp.ne.s32.totalorder %s48, %s49
      %p60 = scmp.eq.s32.totalorder %s19, 0
      %p61 = por %p59, %p60
      %p62 = scmp.ne.s32.totalorder %s48, %s49
      %p63 = scmp.eq.s32.totalorder %s20, 1
      %p64 = por %p62, %p63
      %p66 = scmp.ne.s32.totalorder %s49, %s65
      %p67 = scmp.eq.s32.totalorder %s20, 0
      %p68 = por %p66, %p67
      %s69 = ssub.s32 %s14, %s21
      %p70 = scmp.eq.s32.totalorder %s69, 0
      %s72 = sadd.s32 %s71, 1
      %s73 = scalar_select %p70, %s71, %s72
      %p76 = pneg %p70
      %p77 = scmp.eq.s32.totalorder %s14, 1
      %p78 = por %p76, %p77
      %p79 = scmp.ne.s32.totalorder %s71, %s74
      %p80 = scmp.eq.s32.totalorder %s14, 0
      %p81 = por %p79, %p80
      %p82 = scmp.ne.s32.totalorder %s71, %s74
      %p83 = scmp.eq.s32.totalorder %s19, 1
      %p84 = por %p82, %p83
      %p85 = scmp.ne.s32.totalorder %s74, %s75
      %p86 = scmp.eq.s32.totalorder %s19, 0
      %p87 = por %p85, %p86
      %p88 = scmp.ne.s32.totalorder %s74, %s75
      %p89 = scmp.eq.s32.totalorder %s20, 1
      %p90 = por %p88, %p89
      %p92 = scmp.ne.s32.totalorder %s75, %s91
      %p93 = scmp.eq.s32.totalorder %s20, 0
      %p94 = por %p92, %p93
      %p95 = scmp.le.s32.totalorder 1, %s14
      %p96 = scmp.lt.s32.totalorder %s14, 3
      %p97 = pnand %p95, %p96
      %p98 = pneg %p97
      // Predicated region
      $region9: #{tpu_custom_call.1} parent=5 // pred_check
        _
      $region10: #{tpu_custom_call.1} parent=5 // pred_check_branch
        %100 = sbr.rel (%p97) target = $region12
      $region11: #{tpu_custom_call.1} parent=5 // pred_region
        %s101 = ssub.s32 %s14, 1
        // Predicated region
        $region13: #{tpu_custom_call.1} parent=11 // pred_check
          %p102 = pneg %p35
        $region14: #{tpu_custom_call.1} parent=11 // pred_check_branch
          %104 = sbr.rel (%p102) target = $region16
        $region15: #{tpu_custom_call.1} parent=11 // pred_region
          _
        $region16: #{tpu_custom_call.1} parent=11 // pred_fallthru
          _
      $region12: #{tpu_custom_call.1} parent=5 // pred_fallthru
        _
      %p105 = scmp.lt.s32.totalorder %s14, 2
      // Predicated region
      $region17: #{tpu_custom_call.1} parent=5 // pred_check
        %p106 = pneg %p105
      $region18: #{tpu_custom_call.1} parent=5 // pred_check_branch
        %108 = sbr.rel (%p106) target = $region20
      $region19: #{tpu_custom_call.1} parent=5 // pred_region
        // Predicated region
        $region21: #{tpu_custom_call.1} parent=19 // pred_check
          %p109 = pneg %p55
        $region22: #{tpu_custom_call.1} parent=19 // pred_check_branch
          %111 = sbr.rel (%p109) target = $region24
        $region23: #{tpu_custom_call.1} parent=19 // pred_region
          %s112 = sand.u32 %s45, 1
          %s113 = scalar_lea.sflag [#allocation3], %s112
          %s114 = sand.u32 %s45, 1
          %s115 = smul.addr %s114, 768
          %s116 = scalar_lea.vmem [#allocation2], %s115
          %s117 = smul.u32 12, %s14
          %s119 = ssub.s32 12288, 12288
          %120 = vsyncadd %s113, %s119
          %s121 = smul.addr %s117, 128
          %s122 = scalar_lea.hbm %s1, %s121
          %s123 = sshll.u32 %s116, 4
          %s124 = int_to_ptr.vmem [resolvable:$true] %s123
          %129 = dma.hbm_to_vmem [thread:$0]  %s122, 12288, %s124, %s113, 3072, 1536, 96
        $region24: #{tpu_custom_call.1} parent=19 // pred_fallthru
          _
      $region20: #{tpu_custom_call.1} parent=5 // pred_fallthru
        _
      %p130 = scmp.le.s32.totalorder 1, %s14
      %p131 = scmp.lt.s32.totalorder %s14, 3
      %p132 = pnand %p130, %p131
      %p133 = pneg %p132
      // Predicated region
      $region25: #{tpu_custom_call.1} parent=5 // pred_check
        _
      $region26: #{tpu_custom_call.1} parent=5 // pred_check_branch
        %135 = sbr.rel (%p132) target = $region28
      $region27: #{tpu_custom_call.1} parent=5 // pred_region
        %s136 = ssub.s32 %s14, 1
        %s137 = sand.u32 %s48, 1
        %s138 = scalar_lea.sflag [#allocation3], %s137
        %s139 = sand.u32 %s48, 1
        %s140 = smul.addr %s139, 768
        %s141 = scalar_lea.vmem [#allocation2], %s140
        // Predicated region
        $region29: #{tpu_custom_call.1} parent=27 // pred_check
          %p142 = pneg %p61
        $region30: #{tpu_custom_call.1} parent=27 // pred_check_branch
          %144 = sbr.rel (%p142) target = $region32
        $region31: #{tpu_custom_call.1} parent=27 // pred_region
          %145 = dma.done %s138, 12288
        $region32: #{tpu_custom_call.1} parent=27 // pred_fallthru
          _
        %p146 = pneg %p35
        %p147 = pneg %p32
        %s148 = sand.u32 %s48, 1
        %s149 = scalar_lea.sflag [#allocation3], %s148
        %s150 = sand.u32 %s48, 1
        %s151 = smul.addr %s150, 768
        %s152 = scalar_lea.vmem [#allocation2], %s151
        %p153 = pneg %p61
        %p154 = pneg %p58
        %p155 = pneg %p87
        %p156 = pneg %p84
        %s157 = sand.u32 %s74, 1
        %s158 = scalar_lea.sflag [#allocation4], %s157
        %s159 = sand.u32 %s74, 1
        %s160 = smul.addr %s159, 2304
        %s161 = scalar_lea.vmem [#allocation5], %s160
        %s162 = smul.u32 12, %s19
        %s163 = smul.u32 12, %s19
        %v164 = vld [vmem:[%s0] sm:$0xff]
        %v165 = vld [vmem:[%s0 + $0x8] sm:$0xff]
        %v166 = vld [vmem:[%s0 + $0x10] sm:$0xff]
        %v167 = vld [vmem:[%s0 + $0x18] sm:$0xff]
        %v168 = vld [vmem:[%s0 + $0x20] sm:$0xff]
        %v169 = vld [vmem:[%s0 + $0x28] sm:$0xff]
        %v170 = vld [vmem:[%s0 + $0x30] sm:$0xff]
        %v171 = vld [vmem:[%s0 + $0x38] sm:$0xff]
        %v172 = vld [vmem:[%s0 + $0x40] sm:$0xff]
        %v173 = vld [vmem:[%s0 + $0x48] sm:$0xff]
        %v174 = vld [vmem:[%s0 + $0x50] sm:$0xff]
        %v175 = vld [vmem:[%s0 + $0x58] sm:$0xff]
        %v176 = vld [vmem:[%s0 + $0x60] sm:$0xff]
        %v177 = vld [vmem:[%s0 + $0x68] sm:$0xff]
        %v178 = vld [vmem:[%s0 + $0x70] sm:$0xff]
        %v179 = vld [vmem:[%s0 + $0x78] sm:$0xff]
        %v180 = vld [vmem:[%s0 + $0x80] sm:$0xff]
        %v181 = vld [vmem:[%s0 + $0x88] sm:$0xff]
        %v182 = vld [vmem:[%s0 + $0x90] sm:$0xff]
        %v183 = vld [vmem:[%s0 + $0x98] sm:$0xff]
        %v184 = vld [vmem:[%s0 + $0xa0] sm:$0xff]
        %v185 = vld [vmem:[%s0 + $0xa8] sm:$0xff]
        %v186 = vld [vmem:[%s0 + $0xb0] sm:$0xff]
        %v187 = vld [vmem:[%s0 + $0xb8] sm:$0xff]
        %v188 = vld [vmem:[%s141] sm:$0xff]
        %v189 = vld [vmem:[%s141 + $0x8] sm:$0xff]
        %v190 = vld [vmem:[%s141 + $0x10] sm:$0xff]
        %v191 = vld [vmem:[%s141 + $0x18] sm:$0xff]
        %v192 = vld [vmem:[%s141 + $0x20] sm:$0xff]
        %v193 = vld [vmem:[%s141 + $0x28] sm:$0xff]
        %v194 = vld [vmem:[%s141 + $0x30] sm:$0xff]
        %v195 = vld [vmem:[%s141 + $0x38] sm:$0xff]
        %v196 = vld [vmem:[%s141 + $0x40] sm:$0xff]
        %v197 = vld [vmem:[%s141 + $0x48] sm:$0xff]
        %v198 = vld [vmem:[%s141 + $0x50] sm:$0xff]
        %v199 = vld [vmem:[%s141 + $0x58] sm:$0xff]
        %v200 = vld [vmem:[%s141 + $0x60] sm:$0xff]
        %v201 = vld [vmem:[%s141 + $0x68] sm:$0xff]
        %v202 = vld [vmem:[%s141 + $0x70] sm:$0xff]
        %v203 = vld [vmem:[%s141 + $0x78] sm:$0xff]
        %v204 = vld [vmem:[%s141 + $0x80] sm:$0xff]
        %v205 = vld [vmem:[%s141 + $0x88] sm:$0xff]
        %v206 = vld [vmem:[%s141 + $0x90] sm:$0xff]
        %v207 = vld [vmem:[%s141 + $0x98] sm:$0xff]
        %v208 = vld [vmem:[%s141 + $0xa0] sm:$0xff]
        %v209 = vld [vmem:[%s141 + $0xa8] sm:$0xff]
        %v210 = vld [vmem:[%s141 + $0xb0] sm:$0xff]
        %v211 = vld [vmem:[%s141 + $0xb8] sm:$0xff]
        %v212 = vld [vmem:[%s141 + $0xc0] sm:$0xff]
        %v213 = vld [vmem:[%s141 + $0xc8] sm:$0xff]
        %v214 = vld [vmem:[%s141 + $0xd0] sm:$0xff]
        %v215 = vld [vmem:[%s141 + $0xd8] sm:$0xff]
        %v216 = vld [vmem:[%s141 + $0xe0] sm:$0xff]
        %v217 = vld [vmem:[%s141 + $0xe8] sm:$0xff]
        %v218 = vld [vmem:[%s141 + $0xf0] sm:$0xff]
        %v219 = vld [vmem:[%s141 + $0xf8] sm:$0xff]
        %v220 = vld [vmem:[%s141 + $0x100] sm:$0xff]
        %v221 = vld [vmem:[%s141 + $0x108] sm:$0xff]
        %v222 = vld [vmem:[%s141 + $0x110] sm:$0xff]
        %v223 = vld [vmem:[%s141 + $0x118] sm:$0xff]
        %v224 = vld [vmem:[%s141 + $0x120] sm:$0xff]
        %v225 = vld [vmem:[%s141 + $0x128] sm:$0xff]
        %v226 = vld [vmem:[%s141 + $0x130] sm:$0xff]
        %v227 = vld [vmem:[%s141 + $0x138] sm:$0xff]
        %v228 = vld [vmem:[%s141 + $0x140] sm:$0xff]
        %v229 = vld [vmem:[%s141 + $0x148] sm:$0xff]
        %v230 = vld [vmem:[%s141 + $0x150] sm:$0xff]
        %v231 = vld [vmem:[%s141 + $0x158] sm:$0xff]
        %v232 = vld [vmem:[%s141 + $0x160] sm:$0xff]
        %v233 = vld [vmem:[%s141 + $0x168] sm:$0xff]
        %v234 = vld [vmem:[%s141 + $0x170] sm:$0xff]
        %v235 = vld [vmem:[%s141 + $0x178] sm:$0xff]
        %v236 = vld [vmem:[%s141 + $0x180] sm:$0xff]
        %v237 = vld [vmem:[%s141 + $0x188] sm:$0xff]
        %v238 = vld [vmem:[%s141 + $0x190] sm:$0xff]
        %v239 = vld [vmem:[%s141 + $0x198] sm:$0xff]
        %v240 = vld [vmem:[%s141 + $0x1a0] sm:$0xff]
        %v241 = vld [vmem:[%s141 + $0x1a8] sm:$0xff]
        %v242 = vld [vmem:[%s141 + $0x1b0] sm:$0xff]
        %v243 = vld [vmem:[%s141 + $0x1b8] sm:$0xff]
        %v244 = vld [vmem:[%s141 + $0x1c0] sm:$0xff]
        %v245 = vld [vmem:[%s141 + $0x1c8] sm:$0xff]
        %v246 = vld [vmem:[%s141 + $0x1d0] sm:$0xff]
        %v247 = vld [vmem:[%s141 + $0x1d8] sm:$0xff]
        %v248 = vld [vmem:[%s141 + $0x1e0] sm:$0xff]
        %v249 = vld [vmem:[%s141 + $0x1e8] sm:$0xff]
        %v250 = vld [vmem:[%s141 + $0x1f0] sm:$0xff]
        %v251 = vld [vmem:[%s141 + $0x1f8] sm:$0xff]
        %v252 = vld [vmem:[%s141 + $0x200] sm:$0xff]
        %v253 = vld [vmem:[%s141 + $0x208] sm:$0xff]
        %v254 = vld [vmem:[%s141 + $0x210] sm:$0xff]
        %v255 = vld [vmem:[%s141 + $0x218] sm:$0xff]
        %v256 = vld [vmem:[%s141 + $0x220] sm:$0xff]
        %v257 = vld [vmem:[%s141 + $0x228] sm:$0xff]
        %v258 = vld [vmem:[%s141 + $0x230] sm:$0xff]
        %v259 = vld [vmem:[%s141 + $0x238] sm:$0xff]
        %v260 = vld [vmem:[%s141 + $0x240] sm:$0xff]
        %v261 = vld [vmem:[%s141 + $0x248] sm:$0xff]
        %v262 = vld [vmem:[%s141 + $0x250] sm:$0xff]
        %v263 = vld [vmem:[%s141 + $0x258] sm:$0xff]
        %v264 = vld [vmem:[%s141 + $0x260] sm:$0xff]
        %v265 = vld [vmem:[%s141 + $0x268] sm:$0xff]
        %v266 = vld [vmem:[%s141 + $0x270] sm:$0xff]
        %v267 = vld [vmem:[%s141 + $0x278] sm:$0xff]
        %v268 = vld [vmem:[%s141 + $0x280] sm:$0xff]
        %v269 = vld [vmem:[%s141 + $0x288] sm:$0xff]
        %v270 = vld [vmem:[%s141 + $0x290] sm:$0xff]
        %v271 = vld [vmem:[%s141 + $0x298] sm:$0xff]
        %v272 = vld [vmem:[%s141 + $0x2a0] sm:$0xff]
        %v273 = vld [vmem:[%s141 + $0x2a8] sm:$0xff]
        %v274 = vld [vmem:[%s141 + $0x2b0] sm:$0xff]
        %v275 = vld [vmem:[%s141 + $0x2b8] sm:$0xff]
        %v276 = vld [vmem:[%s141 + $0x2c0] sm:$0xff]
        %v277 = vld [vmem:[%s141 + $0x2c8] sm:$0xff]
        %v278 = vld [vmem:[%s141 + $0x2d0] sm:$0xff]
        %v279 = vld [vmem:[%s141 + $0x2d8] sm:$0xff]
        %v280 = vld [vmem:[%s141 + $0x2e0] sm:$0xff]
        %v281 = vld [vmem:[%s141 + $0x2e8] sm:$0xff]
        %v282 = vld [vmem:[%s141 + $0x2f0] sm:$0xff]
        %v283 = vld [vmem:[%s141 + $0x2f8] sm:$0xff]
        %vm284 = vcmask 523264
        %v286 = vsel %vm284, %v164, 0
        %v289 = vsel %vm284, %v165, 0
        %v292 = vsel %vm284, %v166, 0
        %v295 = vsel %vm284, %v167, 0
        %v298 = vsel %vm284, %v168, 0
        %v301 = vsel %vm284, %v169, 0
        %v304 = vsel %vm284, %v170, 0
        %v307 = vsel %vm284, %v171, 0
        %v310 = vsel %vm284, %v172, 0
        %v313 = vsel %vm284, %v173, 0
        %v316 = vsel %vm284, %v174, 0
        %v319 = vsel %vm284, %v175, 0
        %v322 = vsel %vm284, %v176, 0
        %v325 = vsel %vm284, %v177, 0
        %v328 = vsel %vm284, %v178, 0
        %v331 = vsel %vm284, %v179, 0
        %v334 = vsel %vm284, %v180, 0
        %v337 = vsel %vm284, %v181, 0
        %v340 = vsel %vm284, %v182, 0
        %v343 = vsel %vm284, %v183, 0
        %v346 = vsel %vm284, %v184, 0
        %v349 = vsel %vm284, %v185, 0
        %v352 = vsel %vm284, %v186, 0
        %v355 = vsel %vm284, %v187, 0
        %357 = vmatprep.subr.mxu0 %v189
        %358 = vmatpush1.msra.mxu0 %v188
        %359 = vmatprep.subr.mxu0 %v201
        %360 = vmatpush1.msra.mxu0 %v200
        %361 = vmatprep.subr.mxu0 %v213
        %362 = vmatpush1.msra.mxu0 %v212
        %363 = vmatprep.subr.mxu0 %v225
        %364 = vmatpush1.msra.mxu0 %v224
        %365 = vmatprep.subr.mxu0 %v237
        %366 = vmatpush1.msra.mxu0 %v236
        %367 = vmatprep.subr.mxu0 %v249
        %368 = vmatpush1.msra.mxu0 %v248
        %369 = vmatprep.subr.mxu0 %v261
        %370 = vmatpush1.msra.mxu0 %v260
        %371 = vmatprep.subr.mxu0 %v273
        %372 = vmatpush1.msra.mxu0 %v272
        %373 = vmatprep.subr.mxu0 0.0
        %374 = vmatpush1.msra.mxu0 0.0
        %375 = vmatprep.subr.mxu0 0.0
        %376 = vmatpush1.msra.mxu0 0.0
        %377 = vmatprep.subr.mxu0 0.0
        %378 = vmatpush1.msra.mxu0 0.0
        %379 = vmatprep.subr.mxu0 0.0
        %380 = vmatpush1.msra.mxu0 0.0
        %381 = vmatprep.subr.mxu0 0.0
        %382 = vmatpush1.msra.mxu0 0.0
        %383 = vmatprep.subr.mxu0 0.0
        %384 = vmatpush1.msra.mxu0 0.0
        %385 = vmatprep.subr.mxu0 0.0
        %386 = vmatpush1.msra.mxu0 0.0
        %387 = vmatprep.subr.mxu0 0.0
        %388 = vmatpush1.msra.mxu0 0.0
        %389 = vmatprep.subr.mxu0 0.0
        %390 = vmatpush1.msra.mxu0 0.0
        %391 = vmatprep.subr.mxu0 0.0
        %392 = vmatpush1.msra.mxu0 0.0
        %393 = vmatprep.subr.mxu0 0.0
        %394 = vmatpush1.msra.mxu0 0.0
        %395 = vmatprep.subr.mxu0 0.0
        %396 = vmatpush1.msra.mxu0 0.0
        %397 = vmatprep.subr.mxu0 0.0
        %398 = vmatpush1.msra.mxu0 0.0
        %399 = vmatprep.subr.mxu0 0.0
        %400 = vmatpush1.msra.mxu0 0.0
        %401 = vmatprep.subr.mxu0 0.0
        %402 = vmatpush1.msra.mxu0 0.0
        %403 = vmatprep.subr.mxu0 0.0
        %404 = vmatpush1.msra.mxu0 0.0
        %405 = vmatprep.subr.mxu0 0.0
        %406 = vmatpush1.msra.mxu0 0.0
        %407 = vmatprep.subr.mxu0 0.0
        %408 = vmatpush1.msra.mxu0 0.0
        %409 = vmatprep.subr.mxu0 0.0
        %410 = vmatpush1.msra.mxu0 0.0
        %411 = vmatprep.subr.mxu0 0.0
        %412 = vmatpush1.msra.mxu0 0.0
        %413 = vmatprep.subr.mxu0 0.0
        %414 = vmatpush1.msra.mxu0 0.0
        %415 = vmatprep.subr.mxu0 0.0
        %416 = vmatpush1.msra.mxu0 0.0
        %417 = vmatprep.subr.mxu0 0.0
        %418 = vmatpush1.msra.mxu0 0.0
        %419 = vmatprep.subr.mxu0 0.0
        %420 = vmatpush1.msra.mxu0 0.0
        %421 = vmatprep.mubr.f32.mxu0 0.0
        %422 = vmatmul.mubr.f32.gmra.mrb[0].mxu0 %v286
        %v423 = vpop.f32.mrb[0].mxu0
        %v424 = vadd.f32 0.0, %v423
        %v425 = vpop.f32.mrb[0].mxu0
        %v426 = vadd.f32 0.0, %v425
        %427 = vmatprep.mubr.f32.mxu0 0.0
        %428 = vmatmul.mubr.f32.gmra.mrb[0].mxu0 %v289
        %v429 = vpop.f32.mrb[0].mxu0
        %v430 = vadd.f32 0.0, %v429
        %v431 = vpop.f32.mrb[0].mxu0
        %v432 = vadd.f32 0.0, %v431
        %433 = vmatprep.mubr.f32.mxu0 0.0
        %434 = vmatmul.mubr.f32.gmra.mrb[0].mxu0 %v292
        %v435 = vpop.f32.mrb[0].mxu0
        %v436 = vadd.f32 0.0, %v435
        %v437 = vpop.f32.mrb[0].mxu0
        %v438 = vadd.f32 0.0, %v437
        %439 = vmatprep.mubr.f32.mxu0 0.0
        %440 = vmatmul.mubr.f32.gmra.mrb[0].mxu0 %v295
        %v441 = vpop.f32.mrb[0].mxu0
        %v442 = vadd.f32 0.0, %v441
        %v443 = vpop.f32.mrb[0].mxu0
        %v444 = vadd.f32 0.0, %v443
        %445 = vmatprep.mubr.f32.mxu0 0.0
        %446 = vmatmul.mubr.f32.gmra.mrb[0].mxu0 %v298
        %v447 = vpop.f32.mrb[0].mxu0
        %v448 = vadd.f32 0.0, %v447
        %v449 = vpop.f32.mrb[0].mxu0
        %v450 = vadd.f32 0.0, %v449
        %451 = vmatprep.mubr.f32.mxu0 0.0
        %452 = vmatmul.mubr.f32.gmra.mrb[0].mxu0 %v301
        %v453 = vpop.f32.mrb[0].mxu0
        %v454 = vadd.f32 0.0, %v453
        %v455 = vpop.f32.mrb[0].mxu0
        %v456 = vadd.f32 0.0, %v455
        %457 = vmatprep.mubr.f32.mxu0 0.0
        %458 = vmatmul.mubr.f32.gmra.mrb[0].mxu0 %v304
        %v459 = vpop.f32.mrb[0].mxu0
        %v460 = vadd.f32 0.0, %v459
        %v461 = vpop.f32.mrb[0].mxu0
        %v462 = vadd.f32 0.0, %v461
        %463 = vmatprep.mubr.f32.mxu0 0.0
        %464 = vmatmul.mubr.f32.gmra.mrb[0].mxu0 %v307
        %v465 = vpop.f32.mrb[0].mxu0
        %v466 = vadd.f32 0.0, %v465
        %v467 = vpop.f32.mrb[0].mxu0
        %v468 = vadd.f32 0.0, %v467
        %469 = vmatprep.mubr.f32.mxu0 0.0
        %470 = vmatmul.mubr.f32.gmra.mrb[0].mxu0 %v310
        %v471 = vpop.f32.mrb[0].mxu0
        %v472 = vadd.f32 0.0, %v471
        %v473 = vpop.f32.mrb[0].mxu0
        %v474 = vadd.f32 0.0, %v473
        %475 = vmatprep.mubr.f32.mxu0 0.0
        %476 = vmatmul.mubr.f32.gmra.mrb[0].mxu0 %v313
        %v477 = vpop.f32.mrb[0].mxu0
        %v478 = vadd.f32 0.0, %v477
        %v479 = vpop.f32.mrb[0].mxu0
        %v480 = vadd.f32 0.0, %v479
        %481 = vmatprep.mubr.f32.mxu0 0.0
        %482 = vmatmul.mubr.f32.gmra.mrb[0].mxu0 %v316
        %v483 = vpop.f32.mrb[0].mxu0
        %v484 = vadd.f32 0.0, %v483
        %v485 = vpop.f32.mrb[0].mxu0
        %v486 = vadd.f32 0.0, %v485
        %487 = vmatprep.mubr.f32.mxu0 0.0
        %488 = vmatmul.mubr.f32.gmra.mrb[0].mxu0 %v319
        %v489 = vpop.f32.mrb[0].mxu0
        %v490 = vadd.f32 0.0, %v489
        %v491 = vpop.f32.mrb[0].mxu0
        %v492 = vadd.f32 0.0, %v491
        %493 = vmatprep.mubr.f32.mxu0 0.0
        %494 = vmatmul.mubr.f32.gmra.mrb[0].mxu0 %v322
        %v495 = vpop.f32.mrb[0].mxu0
        %v496 = vadd.f32 0.0, %v495
        %v497 = vpop.f32.mrb[0].mxu0
        %v498 = vadd.f32 0.0, %v497
        %499 = vmatprep.mubr.f32.mxu0 0.0
        %500 = vmatmul.mubr.f32.gmra.mrb[0].mxu0 %v325
        %v501 = vpop.f32.mrb[0].mxu0
        %v502 = vadd.f32 0.0, %v501
        %v503 = vpop.f32.mrb[0].mxu0
        %v504 = vadd.f32 0.0, %v503
        %505 = vmatprep.mubr.f32.mxu0 0.0
        %506 = vmatmul.mubr.f32.gmra.mrb[0].mxu0 %v328
        %v507 = vpop.f32.mrb[0].mxu0
        %v508 = vadd.f32 0.0, %v507
        %v509 = vpop.f32.mrb[0].mxu0
        %v510 = vadd.f32 0.0, %v509
        %511 = vmatprep.mubr.f32.mxu0 0.0
        %512 = vmatmul.mubr.f32.gmra.mrb[0].mxu0 %v331
        %v513 = vpop.f32.mrb[0].mxu0
        %v514 = vadd.f32 0.0, %v513
        %v515 = vpop.f32.mrb[0].mxu0
        %v516 = vadd.f32 0.0, %v515
        %517 = vmatprep.mubr.f32.mxu0 0.0
        %518 = vmatmul.mubr.f32.gmra.mrb[0].mxu0 %v334
        %v519 = vpop.f32.mrb[0].mxu0
        %v520 = vadd.f32 0.0, %v519
        %v521 = vpop.f32.mrb[0].mxu0
        %v522 = vadd.f32 0.0, %v521
        %523 = vmatprep.mubr.f32.mxu0 0.0
        %524 = vmatmul.mubr.f32.gmra.mrb[0].mxu0 %v337
        %v525 = vpop.f32.mrb[0].mxu0
        %v526 = vadd.f32 0.0, %v525
        %v527 = vpop.f32.mrb[0].mxu0
        %v528 = vadd.f32 0.0, %v527
        %529 = vmatprep.mubr.f32.mxu0 0.0
        %530 = vmatmul.mubr.f32.gmra.mrb[0].mxu0 %v340
        %v531 = vpop.f32.mrb[0].mxu0
        %v532 = vadd.f32 0.0, %v531
        %v533 = vpop.f32.mrb[0].mxu0
        %v534 = vadd.f32 0.0, %v533
        %535 = vmatprep.mubr.f32.mxu0 0.0
        %536 = vmatmul.mubr.f32.gmra.mrb[0].mxu0 %v343
        %v537 = vpop.f32.mrb[0].mxu0
        %v538 = vadd.f32 0.0, %v537
        %v539 = vpop.f32.mrb[0].mxu0
        %v540 = vadd.f32 0.0, %v539
        %541 = vmatprep.mubr.f32.mxu0 0.0
        %542 = vmatmul.mubr.f32.gmra.mrb[0].mxu0 %v346
        %v543 = vpop.f32.mrb[0].mxu0
        %v544 = vadd.f32 0.0, %v543
        %v545 = vpop.f32.mrb[0].mxu0
        %v546 = vadd.f32 0.0, %v545
        %547 = vmatprep.mubr.f32.mxu0 0.0
        %548 = vmatmul.mubr.f32.gmra.mrb[0].mxu0 %v349
        %v549 = vpop.f32.mrb[0].mxu0
        %v550 = vadd.f32 0.0, %v549
        %v551 = vpop.f32.mrb[0].mxu0
        %v552 = vadd.f32 0.0, %v551
        %553 = vmatprep.mubr.f32.mxu0 0.0
        %554 = vmatmul.mubr.f32.gmra.mrb[0].mxu0 %v352
        %v555 = vpop.f32.mrb[0].mxu0
        %v556 = vadd.f32 0.0, %v555
        %v557 = vpop.f32.mrb[0].mxu0
        %v558 = vadd.f32 0.0, %v557
        %559 = vmatprep.mubr.f32.mxu0 0.0
        %560 = vmatmul.mubr.f32.gmra.mrb[0].mxu0 %v355
        %v561 = vpop.f32.mrb[0].mxu0
        %v562 = vadd.f32 0.0, %v561
        %v563 = vpop.f32.mrb[0].mxu0
        %v564 = vadd.f32 0.0, %v563
        %565 = vdwg.mxu0
        %566 = vmatprep.subr.mxu0 %v191
        %567 = vmatpush1.msra.mxu0 %v190
        %568 = vmatprep.subr.mxu0 %v203
        %569 = vmatpush1.msra.mxu0 %v202
        %570 = vmatprep.subr.mxu0 %v215
        %571 = vmatpush1.msra.mxu0 %v214
        %572 = vmatprep.subr.mxu0 %v227
        %573 = vmatpush1.msra.mxu0 %v226
        %574 = vmatprep.subr.mxu0 %v239
        %575 = vmatpush1.msra.mxu0 %v238
        %576 = vmatprep.subr.mxu0 %v251
        %577 = vmatpush1.msra.mxu0 %v250
        %578 = vmatprep.subr.mxu0 %v263
        %579 = vmatpush1.msra.mxu0 %v262
        %580 = vmatprep.subr.mxu0 %v275
        %581 = vmatpush1.msra.mxu0 %v274
        %582 = vmatprep.subr.mxu0 0.0
        %583 = vmatpush1.msra.mxu0 0.0
        %584 = vmatprep.subr.mxu0 0.0
        %585 = vmatpush1.msra.mxu0 0.0
        %586 = vmatprep.subr.mxu0 0.0
        %587 = vmatpush1.msra.mxu0 0.0
        %588 = vmatprep.subr.mxu0 0.0
        %589 = vmatpush1.msra.mxu0 0.0
        %590 = vmatprep.subr.mxu0 0.0
        %591 = vmatpush1.msra.mxu0 0.0
        %592 = vmatprep.subr.mxu0 0.0
        %593 = vmatpush1.msra.mxu0 0.0
        %594 = vmatprep.subr.mxu0 0.0
        %595 = vmatpush1.msra.mxu0 0.0
        %596 = vmatprep.subr.mxu0 0.0
        %597 = vmatpush1.msra.mxu0 0.0
        %598 = vmatprep.subr.mxu0 0.0
        %599 = vmatpush1.msra.mxu0 0.0
        %600 = vmatprep.subr.mxu0 0.0
        %601 = vmatpush1.msra.mxu0 0.0
        %602 = vmatprep.subr.mxu0 0.0
        %603 = vmatpush1.msra.mxu0 0.0
        %604 = vmatprep.subr.mxu0 0.0
        %605 = vmatpush1.msra.mxu0 0.0
        %606 = vmatprep.subr.mxu0 0.0
        %607 = vmatpush1.msra.mxu0 0.0
        %608 = vmatprep.subr.mxu0 0.0
        %609 = vmatpush1.msra.mxu0 0.0
        %610 = vmatprep.subr.mxu0 0.0
        %611 = vmatpush1.msra.mxu0 0.0
        %612 = vmatprep.subr.mxu0 0.0
        %613 = vmatpush1.msra.mxu0 0.0
        %614 = vmatprep.subr.mxu0 0.0
        %615 = vmatpush1.msra.mxu0 0.0
        %616 = vmatprep.subr.mxu0 0.0
        %617 = vmatpush1.msra.mxu0 0.0
        %618 = vmatprep.subr.mxu0 0.0
        %619 = vmatpush1.msra.mxu0 0.0
        %620 = vmatprep.subr.mxu0 0.0
        %621 = vmatpush1.msra.mxu0 0.0
        %622 = vmatprep.subr.mxu0 0.0
        %623 = vmatpush1.msra.mxu0 0.0
        %624 = vmatprep.subr.mxu0 0.0
        %625 = vmatpush1.msra.mxu0 0.0
        %626 = vmatprep.subr.mxu0 0.0
        %627 = vmatpush1.msra.mxu0 0.0
        %628 = vmatprep.subr.mxu0 0.0
        %629 = vmatpush1.msra.mxu0 0.0
        %630 = vmatprep.mubr.f32.mxu0 0.0
        %631 = vmatmul.mubr.f32.gmra.mrb[0].mxu0 %v286
        %v632 = vpop.f32.mrb[0].mxu0
        %v633 = vadd.f32 0.0, %v632
        %v634 = vpop.f32.mrb[0].mxu0
        %v635 = vadd.f32 0.0, %v634
        %636 = vmatprep.mubr.f32.mxu0 0.0
        %637 = vmatmul.mubr.f32.gmra.mrb[0].mxu0 %v289
        %v638 = vpop.f32.mrb[0].mxu0
        %v639 = vadd.f32 0.0, %v638
        %v640 = vpop.f32.mrb[0].mxu0
        %v641 = vadd.f32 0.0, %v640
        %642 = vmatprep.mubr.f32.mxu0 0.0
        %643 = vmatmul.mubr.f32.gmra.mrb[0].mxu0 %v292
        %v644 = vpop.f32.mrb[0].mxu0
        %v645 = vadd.f32 0.0, %v644
        %v646 = vpop.f32.mrb[0].mxu0
        %v647 = vadd.f32 0.0, %v646
        %648 = vmatprep.mubr.f32.mxu0 0.0
        %649 = vmatmul.mubr.f32.gmra.mrb[0].mxu0 %v295
        %v650 = vpop.f32.mrb[0].mxu0
        %v651 = vadd.f32 0.0, %v650
        %v652 = vpop.f32.mrb[0].mxu0
        %v653 = vadd.f32 0.0, %v652
        %654 = vmatprep.mubr.f32.mxu0 0.0
        %655 = vmatmul.mubr.f32.gmra.mrb[0].mxu0 %v298
        %v656 = vpop.f32.mrb[0].mxu0
        %v657 = vadd.f32 0.0, %v656
        %v658 = vpop.f32.mrb[0].mxu0
        %v659 = vadd.f32 0.0, %v658
        %660 = vmatprep.mubr.f32.mxu0 0.0
        %661 = vmatmul.mubr.f32.gmra.mrb[0].mxu0 %v301
        %v662 = vpop.f32.mrb[0].mxu0
        %v663 = vadd.f32 0.0, %v662
        %v664 = vpop.f32.mrb[0].mxu0
        %v665 = vadd.f32 0.0, %v664
        %666 = vmatprep.mubr.f32.mxu0 0.0
        %667 = vmatmul.mubr.f32.gmra.mrb[0].mxu0 %v304
        %v668 = vpop.f32.mrb[0].mxu0
        %v669 = vadd.f32 0.0, %v668
        %v670 = vpop.f32.mrb[0].mxu0
        %v671 = vadd.f32 0.0, %v670
        %672 = vmatprep.mubr.f32.mxu0 0.0
        %673 = vmatmul.mubr.f32.gmra.mrb[0].mxu0 %v307
        %v674 = vpop.f32.mrb[0].mxu0
        %v675 = vadd.f32 0.0, %v674
        %v676 = vpop.f32.mrb[0].mxu0
        %v677 = vadd.f32 0.0, %v676
        %678 = vmatprep.mubr.f32.mxu0 0.0
        %679 = vmatmul.mubr.f32.gmra.mrb[0].mxu0 %v310
        %v680 = vpop.f32.mrb[0].mxu0
        %v681 = vadd.f32 0.0, %v680
        %v682 = vpop.f32.mrb[0].mxu0
        %v683 = vadd.f32 0.0, %v682
        %684 = vmatprep.mubr.f32.mxu0 0.0
        %685 = vmatmul.mubr.f32.gmra.mrb[0].mxu0 %v313
        %v686 = vpop.f32.mrb[0].mxu0
        %v687 = vadd.f32 0.0, %v686
        %v688 = vpop.f32.mrb[0].mxu0
        %v689 = vadd.f32 0.0, %v688
        %690 = vmatprep.mubr.f32.mxu0 0.0
        %691 = vmatmul.mubr.f32.gmra.mrb[0].mxu0 %v316
        %v692 = vpop.f32.mrb[0].mxu0
        %v693 = vadd.f32 0.0, %v692
        %v694 = vpop.f32.mrb[0].mxu0
        %v695 = vadd.f32 0.0, %v694
        %696 = vmatprep.mubr.f32.mxu0 0.0
        %697 = vmatmul.mubr.f32.gmra.mrb[0].mxu0 %v319
        %v698 = vpop.f32.mrb[0].mxu0
        %v699 = vadd.f32 0.0, %v698
        %v700 = vpop.f32.mrb[0].mxu0
        %v701 = vadd.f32 0.0, %v700
        %702 = vmatprep.mubr.f32.mxu0 0.0
        %703 = vmatmul.mubr.f32.gmra.mrb[0].mxu0 %v322
        %v704 = vpop.f32.mrb[0].mxu0
        %v705 = vadd.f32 0.0, %v704
        %v706 = vpop.f32.mrb[0].mxu0
        %v707 = vadd.f32 0.0, %v706
        %708 = vmatprep.mubr.f32.mxu0 0.0
        %709 = vmatmul.mubr.f32.gmra.mrb[0].mxu0 %v325
        %v710 = vpop.f32.mrb[0].mxu0
        %v711 = vadd.f32 0.0, %v710
        %v712 = vpop.f32.mrb[0].mxu0
        %v713 = vadd.f32 0.0, %v712
        %714 = vmatprep.mubr.f32.mxu0 0.0
        %715 = vmatmul.mubr.f32.gmra.mrb[0].mxu0 %v328
        %v716 = vpop.f32.mrb[0].mxu0
        %v717 = vadd.f32 0.0, %v716
        %v718 = vpop.f32.mrb[0].mxu0
        %v719 = vadd.f32 0.0, %v718
        %720 = vmatprep.mubr.f32.mxu0 0.0
        %721 = vmatmul.mubr.f32.gmra.mrb[0].mxu0 %v331
        %v722 = vpop.f32.mrb[0].mxu0
        %v723 = vadd.f32 0.0, %v722
        %v724 = vpop.f32.mrb[0].mxu0
        %v725 = vadd.f32 0.0, %v724
        %726 = vmatprep.mubr.f32.mxu0 0.0
        %727 = vmatmul.mubr.f32.gmra.mrb[0].mxu0 %v334
        %v728 = vpop.f32.mrb[0].mxu0
        %v729 = vadd.f32 0.0, %v728
        %v730 = vpop.f32.mrb[0].mxu0
        %v731 = vadd.f32 0.0, %v730
        %732 = vmatprep.mubr.f32.mxu0 0.0
        %733 = vmatmul.mubr.f32.gmra.mrb[0].mxu0 %v337
        %v734 = vpop.f32.mrb[0].mxu0
        %v735 = vadd.f32 0.0, %v734
        %v736 = vpop.f32.mrb[0].mxu0
        %v737 = vadd.f32 0.0, %v736
        %738 = vmatprep.mubr.f32.mxu0 0.0
        %739 = vmatmul.mubr.f32.gmra.mrb[0].mxu0 %v340
        %v740 = vpop.f32.mrb[0].mxu0
        %v741 = vadd.f32 0.0, %v740
        %v742 = vpop.f32.mrb[0].mxu0
        %v743 = vadd.f32 0.0, %v742
        %744 = vmatprep.mubr.f32.mxu0 0.0
        %745 = vmatmul.mubr.f32.gmra.mrb[0].mxu0 %v343
        %v746 = vpop.f32.mrb[0].mxu0
        %v747 = vadd.f32 0.0, %v746
        %v748 = vpop.f32.mrb[0].mxu0
        %v749 = vadd.f32 0.0, %v748
        %750 = vmatprep.mubr.f32.mxu0 0.0
        %751 = vmatmul.mubr.f32.gmra.mrb[0].mxu0 %v346
        %v752 = vpop.f32.mrb[0].mxu0
        %v753 = vadd.f32 0.0, %v752
        %v754 = vpop.f32.mrb[0].mxu0
        %v755 = vadd.f32 0.0, %v754
        %756 = vmatprep.mubr.f32.mxu0 0.0
        %757 = vmatmul.mubr.f32.gmra.mrb[0].mxu0 %v349
        %v758 = vpop.f32.mrb[0].mxu0
        %v759 = vadd.f32 0.0, %v758
        %v760 = vpop.f32.mrb[0].mxu0
        %v761 = vadd.f32 0.0, %v760
        %762 = vmatprep.mubr.f32.mxu0 0.0
        %763 = vmatmul.mubr.f32.gmra.mrb[0].mxu0 %v352
        %v764 = vpop.f32.mrb[0].mxu0
        %v765 = vadd.f32 0.0, %v764
        %v766 = vpop.f32.mrb[0].mxu0
        %v767 = vadd.f32 0.0, %v766
        %768 = vmatprep.mubr.f32.mxu0 0.0
        %769 = vmatmul.mubr.f32.gmra.mrb[0].mxu0 %v355
        %v770 = vpop.f32.mrb[0].mxu0
        %v771 = vadd.f32 0.0, %v770
        %v772 = vpop.f32.mrb[0].mxu0
        %v773 = vadd.f32 0.0, %v772
        %774 = vdwg.mxu0
        %775 = vmatprep.subr.mxu0 %v193
        %776 = vmatpush1.msra.mxu0 %v192
        %777 = vmatprep.subr.mxu0 %v205
        %778 = vmatpush1.msra.mxu0 %v204
        %779 = vmatprep.subr.mxu0 %v217
        %780 = vmatpush1.msra.mxu0 %v216
        %781 = vmatprep.subr.mxu0 %v229
        %782 = vmatpush1.msra.mxu0 %v228
        %783 = vmatprep.subr.mxu0 %v241
        %784 = vmatpush1.msra.mxu0 %v240
        %785 = vmatprep.subr.mxu0 %v253
        %786 = vmatpush1.msra.mxu0 %v252
        %787 = vmatprep.subr.mxu0 %v265
        %788 = vmatpush1.msra.mxu0 %v264
        %789 = vmatprep.subr.mxu0 %v277
        %790 = vmatpush1.msra.mxu0 %v276
        %791 = vmatprep.subr.mxu0 0.0
        %792 = vmatpush1.msra.mxu0 0.0
        %793 = vmatprep.subr.mxu0 0.0
        %794 = vmatpush1.msra.mxu0 0.0
        %795 = vmatprep.subr.mxu0 0.0
        %796 = vmatpush1.msra.mxu0 0.0
        %797 = vmatprep.subr.mxu0 0.0
        %798 = vmatpush1.msra.mxu0 0.0
        %799 = vmatprep.subr.mxu0 0.0
        %800 = vmatpush1.msra.mxu0 0.0
        %801 = vmatprep.subr.mxu0 0.0
        %802 = vmatpush1.msra.mxu0 0.0
        %803 = vmatprep.subr.mxu0 0.0
        %804 = vmatpush1.msra.mxu0 0.0
        %805 = vmatprep.subr.mxu0 0.0
        %806 = vmatpush1.msra.mxu0 0.0
        %807 = vmatprep.subr.mxu0 0.0
        %808 = vmatpush1.msra.mxu0 0.0
        %809 = vmatprep.subr.mxu0 0.0
        %810 = vmatpush1.msra.mxu0 0.0
        %811 = vmatprep.subr.mxu0 0.0
        %812 = vmatpush1.msra.mxu0 0.0
        %813 = vmatprep.subr.mxu0 0.0
        %814 = vmatpush1.msra.mxu0 0.0
        %815 = vmatprep.subr.mxu0 0.0
        %816 = vmatpush1.msra.mxu0 0.0
        %817 = vmatprep.subr.mxu0 0.0
        %818 = vmatpush1.msra.mxu0 0.0
        %819 = vmatprep.subr.mxu0 0.0
        %820 = vmatpush1.msra.mxu0 0.0
        %821 = vmatprep.subr.mxu0 0.0
        %822 = vmatpush1.msra.mxu0 0.0
        %823 = vmatprep.subr.mxu0 0.0
        %824 = vmatpush1.msra.mxu0 0.0
        %825 = vmatprep.subr.mxu0 0.0
        %826 = vmatpush1.msra.mxu0 0.0
        %827 = vmatprep.subr.mxu0 0.0
        %828 = vmatpush1.msra.mxu0 0.0
        %829 = vmatprep.subr.mxu0 0.0
        %830 = vmatpush1.msra.mxu0 0.0
        %831 = vmatprep.subr.mxu0 0.0
        %832 = vmatpush1.msra.mxu0 0.0
        %833 = vmatprep.subr.mxu0 0.0
        %834 = vmatpush1.msra.mxu0 0.0
        %835 = vmatprep.subr.mxu0 0.0
        %836 = vmatpush1.msra.mxu0 0.0
        %837 = vmatprep.subr.mxu0 0.0
        %838 = vmatpush1.msra.mxu0 0.0
        %839 = vmatprep.mubr.f32.mxu0 0.0
        %840 = vmatmul.mubr.f32.gmra.mrb[0].mxu0 %v286
        %v841 = vpop.f32.mrb[0].mxu0
        %v842 = vadd.f32 0.0, %v841
        %v843 = vpop.f32.mrb[0].mxu0
        %v844 = vadd.f32 0.0, %v843
        %845 = vmatprep.mubr.f32.mxu0 0.0
        %846 = vmatmul.mubr.f32.gmra.mrb[0].mxu0 %v289
        %v847 = vpop.f32.mrb[0].mxu0
        %v848 = vadd.f32 0.0, %v847
        %v849 = vpop.f32.mrb[0].mxu0
        %v850 = vadd.f32 0.0, %v849
        %851 = vmatprep.mubr.f32.mxu0 0.0
        %852 = vmatmul.mubr.f32.gmra.mrb[0].mxu0 %v292
        %v853 = vpop.f32.mrb[0].mxu0
        %v854 = vadd.f32 0.0, %v853
        %v855 = vpop.f32.mrb[0].mxu0
        %v856 = vadd.f32 0.0, %v855
        %857 = vmatprep.mubr.f32.mxu0 0.0
        %858 = vmatmul.mubr.f32.gmra.mrb[0].mxu0 %v295
        %v859 = vpop.f32.mrb[0].mxu0
        %v860 = vadd.f32 0.0, %v859
        %v861 = vpop.f32.mrb[0].mxu0
        %v862 = vadd.f32 0.0, %v861
        %863 = vmatprep.mubr.f32.mxu0 0.0
        %864 = vmatmul.mubr.f32.gmra.mrb[0].mxu0 %v298
        %v865 = vpop.f32.mrb[0].mxu0
        %v866 = vadd.f32 0.0, %v865
        %v867 = vpop.f32.mrb[0].mxu0
        %v868 = vadd.f32 0.0, %v867
        %869 = vmatprep.mubr.f32.mxu0 0.0
        %870 = vmatmul.mubr.f32.gmra.mrb[0].mxu0 %v301
        %v871 = vpop.f32.mrb[0].mxu0
        %v872 = vadd.f32 0.0, %v871
        %v873 = vpop.f32.mrb[0].mxu0
        %v874 = vadd.f32 0.0, %v873
        %875 = vmatprep.mubr.f32.mxu0 0.0
        %876 = vmatmul.mubr.f32.gmra.mrb[0].mxu0 %v304
        %v877 = vpop.f32.mrb[0].mxu0
        %v878 = vadd.f32 0.0, %v877
        %v879 = vpop.f32.mrb[0].mxu0
        %v880 = vadd.f32 0.0, %v879
        %881 = vmatprep.mubr.f32.mxu0 0.0
        %882 = vmatmul.mubr.f32.gmra.mrb[0].mxu0 %v307
        %v883 = vpop.f32.mrb[0].mxu0
        %v884 = vadd.f32 0.0, %v883
        %v885 = vpop.f32.mrb[0].mxu0
        %v886 = vadd.f32 0.0, %v885
        %887 = vmatprep.mubr.f32.mxu0 0.0
        %888 = vmatmul.mubr.f32.gmra.mrb[0].mxu0 %v310
        %v889 = vpop.f32.mrb[0].mxu0
        %v890 = vadd.f32 0.0, %v889
        %v891 = vpop.f32.mrb[0].mxu0
        %v892 = vadd.f32 0.0, %v891
        %893 = vmatprep.mubr.f32.mxu0 0.0
        %894 = vmatmul.mubr.f32.gmra.mrb[0].mxu0 %v313
        %v895 = vpop.f32.mrb[0].mxu0
        %v896 = vadd.f32 0.0, %v895
        %v897 = vpop.f32.mrb[0].mxu0
        %v898 = vadd.f32 0.0, %v897
        %899 = vmatprep.mubr.f32.mxu0 0.0
        %900 = vmatmul.mubr.f32.gmra.mrb[0].mxu0 %v316
        %v901 = vpop.f32.mrb[0].mxu0
        %v902 = vadd.f32 0.0, %v901
        %v903 = vpop.f32.mrb[0].mxu0
        %v904 = vadd.f32 0.0, %v903
        %905 = vmatprep.mubr.f32.mxu0 0.0
        %906 = vmatmul.mubr.f32.gmra.mrb[0].mxu0 %v319
        %v907 = vpop.f32.mrb[0].mxu0
        %v908 = vadd.f32 0.0, %v907
        %v909 = vpop.f32.mrb[0].mxu0
        %v910 = vadd.f32 0.0, %v909
        %911 = vmatprep.mubr.f32.mxu0 0.0
        %912 = vmatmul.mubr.f32.gmra.mrb[0].mxu0 %v322
        %v913 = vpop.f32.mrb[0].mxu0
        %v914 = vadd.f32 0.0, %v913
        %v915 = vpop.f32.mrb[0].mxu0
        %v916 = vadd.f32 0.0, %v915
        %917 = vmatprep.mubr.f32.mxu0 0.0
        %918 = vmatmul.mubr.f32.gmra.mrb[0].mxu0 %v325
        %v919 = vpop.f32.mrb[0].mxu0
        %v920 = vadd.f32 0.0, %v919
        %v921 = vpop.f32.mrb[0].mxu0
        %v922 = vadd.f32 0.0, %v921
        %923 = vmatprep.mubr.f32.mxu0 0.0
        %924 = vmatmul.mubr.f32.gmra.mrb[0].mxu0 %v328
        %v925 = vpop.f32.mrb[0].mxu0
        %v926 = vadd.f32 0.0, %v925
        %v927 = vpop.f32.mrb[0].mxu0
        %v928 = vadd.f32 0.0, %v927
        %929 = vmatprep.mubr.f32.mxu0 0.0
        %930 = vmatmul.mubr.f32.gmra.mrb[0].mxu0 %v331
        %v931 = vpop.f32.mrb[0].mxu0
        %v932 = vadd.f32 0.0, %v931
        %v933 = vpop.f32.mrb[0].mxu0
        %v934 = vadd.f32 0.0, %v933
        %935 = vmatprep.mubr.f32.mxu0 0.0
        %936 = vmatmul.mubr.f32.gmra.mrb[0].mxu0 %v334
        %v937 = vpop.f32.mrb[0].mxu0
        %v938 = vadd.f32 0.0, %v937
        %v939 = vpop.f32.mrb[0].mxu0
        %v940 = vadd.f32 0.0, %v939
        %941 = vmatprep.mubr.f32.mxu0 0.0
        %942 = vmatmul.mubr.f32.gmra.mrb[0].mxu0 %v337
        %v943 = vpop.f32.mrb[0].mxu0
        %v944 = vadd.f32 0.0, %v943
        %v945 = vpop.f32.mrb[0].mxu0
        %v946 = vadd.f32 0.0, %v945
        %947 = vmatprep.mubr.f32.mxu0 0.0
        %948 = vmatmul.mubr.f32.gmra.mrb[0].mxu0 %v340
        %v949 = vpop.f32.mrb[0].mxu0
        %v950 = vadd.f32 0.0, %v949
        %v951 = vpop.f32.mrb[0].mxu0
        %v952 = vadd.f32 0.0, %v951
        %953 = vmatprep.mubr.f32.mxu0 0.0
        %954 = vmatmul.mubr.f32.gmra.mrb[0].mxu0 %v343
        %v955 = vpop.f32.mrb[0].mxu0
        %v956 = vadd.f32 0.0, %v955
        %v957 = vpop.f32.mrb[0].mxu0
        %v958 = vadd.f32 0.0, %v957
        %959 = vmatprep.mubr.f32.mxu0 0.0
        %960 = vmatmul.mubr.f32.gmra.mrb[0].mxu0 %v346
        %v961 = vpop.f32.mrb[0].mxu0
        %v962 = vadd.f32 0.0, %v961
        %v963 = vpop.f32.mrb[0].mxu0
        %v964 = vadd.f32 0.0, %v963
        %965 = vmatprep.mubr.f32.mxu0 0.0
        %966 = vmatmul.mubr.f32.gmra.mrb[0].mxu0 %v349
        %v967 = vpop.f32.mrb[0].mxu0
        %v968 = vadd.f32 0.0, %v967
        %v969 = vpop.f32.mrb[0].mxu0
        %v970 = vadd.f32 0.0, %v969
        %971 = vmatprep.mubr.f32.mxu0 0.0
        %972 = vmatmul.mubr.f32.gmra.mrb[0].mxu0 %v352
        %v973 = vpop.f32.mrb[0].mxu0
        %v974 = vadd.f32 0.0, %v973
        %v975 = vpop.f32.mrb[0].mxu0
        %v976 = vadd.f32 0.0, %v975
        %977 = vmatprep.mubr.f32.mxu0 0.0
        %978 = vmatmul.mubr.f32.gmra.mrb[0].mxu0 %v355
        %v979 = vpop.f32.mrb[0].mxu0
        %v980 = vadd.f32 0.0, %v979
        %v981 = vpop.f32.mrb[0].mxu0
        %v982 = vadd.f32 0.0, %v981
        %983 = vdwg.mxu0
        %984 = vmatprep.subr.mxu0 %v195
        %985 = vmatpush1.msra.mxu0 %v194
        %986 = vmatprep.subr.mxu0 %v207
        %987 = vmatpush1.msra.mxu0 %v206
        %988 = vmatprep.subr.mxu0 %v219
        %989 = vmatpush1.msra.mxu0 %v218
        %990 = vmatprep.subr.mxu0 %v231
        %991 = vmatpush1.msra.mxu0 %v230
        %992 = vmatprep.subr.mxu0 %v243
        %993 = vmatpush1.msra.mxu0 %v242
        %994 = vmatprep.subr.mxu0 %v255
        %995 = vmatpush1.msra.mxu0 %v254
        %996 = vmatprep.subr.mxu0 %v267
        %997 = vmatpush1.msra.mxu0 %v266
        %998 = vmatprep.subr.mxu0 %v279
        %999 = vmatpush1.msra.mxu0 %v278
        %1000 = vmatprep.subr.mxu0 0.0
        %1001 = vmatpush1.msra.mxu0 0.0
        %1002 = vmatprep.subr.mxu0 0.0
        %1003 = vmatpush1.msra.mxu0 0.0
        %1004 = vmatprep.subr.mxu0 0.0
        %1005 = vmatpush1.msra.mxu0 0.0
        %1006 = vmatprep.subr.mxu0 0.0
        %1007 = vmatpush1.msra.mxu0 0.0
        %1008 = vmatprep.subr.mxu0 0.0
        %1009 = vmatpush1.msra.mxu0 0.0
        %1010 = vmatprep.subr.mxu0 0.0
        %1011 = vmatpush1.msra.mxu0 0.0
        %1012 = vmatprep.subr.mxu0 0.0
        %1013 = vmatpush1.msra.mxu0 0.0
        %1014 = vmatprep.subr.mxu0 0.0
        %1015 = vmatpush1.msra.mxu0 0.0
        %1016 = vmatprep.subr.mxu0 0.0
        %1017 = vmatpush1.msra.mxu0 0.0
        %1018 = vmatprep.subr.mxu0 0.0
        %1019 = vmatpush1.msra.mxu0 0.0
        %1020 = vmatprep.subr.mxu0 0.0
        %1021 = vmatpush1.msra.mxu0 0.0
        %1022 = vmatprep.subr.mxu0 0.0
        %1023 = vmatpush1.msra.mxu0 0.0
        %1024 = vmatprep.subr.mxu0 0.0
        %1025 = vmatpush1.msra.mxu0 0.0
        %1026 = vmatprep.subr.mxu0 0.0
        %1027 = vmatpush1.msra.mxu0 0.0
        %1028 = vmatprep.subr.mxu0 0.0
        %1029 = vmatpush1.msra.mxu0 0.0
        %1030 = vmatprep.subr.mxu0 0.0
        %1031 = vmatpush1.msra.mxu0 0.0
        %1032 = vmatprep.subr.mxu0 0.0
        %1033 = vmatpush1.msra.mxu0 0.0
        %1034 = vmatprep.subr.mxu0 0.0
        %1035 = vmatpush1.msra.mxu0 0.0
        %1036 = vmatprep.subr.mxu0 0.0
        %1037 = vmatpush1.msra.mxu0 0.0
        %1038 = vmatprep.subr.mxu0 0.0
        %1039 = vmatpush1.msra.mxu0 0.0
        %1040 = vmatprep.subr.mxu0 0.0
        %1041 = vmatpush1.msra.mxu0 0.0
        %1042 = vmatprep.subr.mxu0 0.0
        %1043 = vmatpush1.msra.mxu0 0.0
        %1044 = vmatprep.subr.mxu0 0.0
        %1045 = vmatpush1.msra.mxu0 0.0
        %1046 = vmatprep.subr.mxu0 0.0
        %1047 = vmatpush1.msra.mxu0 0.0
        %1048 = vmatprep.mubr.f32.mxu0 0.0
        %1049 = vmatmul.mubr.f32.gmra.mrb[0].mxu0 %v286
        %v1050 = vpop.f32.mrb[0].mxu0
        %v1051 = vadd.f32 0.0, %v1050
        %v1052 = vpop.f32.mrb[0].mxu0
        %v1053 = vadd.f32 0.0, %v1052
        %1054 = vmatprep.mubr.f32.mxu0 0.0
        %1055 = vmatmul.mubr.f32.gmra.mrb[0].mxu0 %v289
        %v1056 = vpop.f32.mrb[0].mxu0
        %v1057 = vadd.f32 0.0, %v1056
        %v1058 = vpop.f32.mrb[0].mxu0
        %v1059 = vadd.f32 0.0, %v1058
        %1060 = vmatprep.mubr.f32.mxu0 0.0
        %1061 = vmatmul.mubr.f32.gmra.mrb[0].mxu0 %v292
        %v1062 = vpop.f32.mrb[0].mxu0
        %v1063 = vadd.f32 0.0, %v1062
        %v1064 = vpop.f32.mrb[0].mxu0
        %v1065 = vadd.f32 0.0, %v1064
        %1066 = vmatprep.mubr.f32.mxu0 0.0
        %1067 = vmatmul.mubr.f32.gmra.mrb[0].mxu0 %v295
        %v1068 = vpop.f32.mrb[0].mxu0
        %v1069 = vadd.f32 0.0, %v1068
        %v1070 = vpop.f32.mrb[0].mxu0
        %v1071 = vadd.f32 0.0, %v1070
        %1072 = vmatprep.mubr.f32.mxu0 0.0
        %1073 = vmatmul.mubr.f32.gmra.mrb[0].mxu0 %v298
        %v1074 = vpop.f32.mrb[0].mxu0
        %v1075 = vadd.f32 0.0, %v1074
        %v1076 = vpop.f32.mrb[0].mxu0
        %v1077 = vadd.f32 0.0, %v1076
        %1078 = vmatprep.mubr.f32.mxu0 0.0
        %1079 = vmatmul.mubr.f32.gmra.mrb[0].mxu0 %v301
        %v1080 = vpop.f32.mrb[0].mxu0
        %v1081 = vadd.f32 0.0, %v1080
        %v1082 = vpop.f32.mrb[0].mxu0
        %v1083 = vadd.f32 0.0, %v1082
        %1084 = vmatprep.mubr.f32.mxu0 0.0
        %1085 = vmatmul.mubr.f32.gmra.mrb[0].mxu0 %v304
        %v1086 = vpop.f32.mrb[0].mxu0
        %v1087 = vadd.f32 0.0, %v1086
        %v1088 = vpop.f32.mrb[0].mxu0
        %v1089 = vadd.f32 0.0, %v1088
        %1090 = vmatprep.mubr.f32.mxu0 0.0
        %1091 = vmatmul.mubr.f32.gmra.mrb[0].mxu0 %v307
        %v1092 = vpop.f32.mrb[0].mxu0
        %v1093 = vadd.f32 0.0, %v1092
        %v1094 = vpop.f32.mrb[0].mxu0
        %v1095 = vadd.f32 0.0, %v1094
        %1096 = vmatprep.mubr.f32.mxu0 0.0
        %1097 = vmatmul.mubr.f32.gmra.mrb[0].mxu0 %v310
        %v1098 = vpop.f32.mrb[0].mxu0
        %v1099 = vadd.f32 0.0, %v1098
        %v1100 = vpop.f32.mrb[0].mxu0
        %v1101 = vadd.f32 0.0, %v1100
        %1102 = vmatprep.mubr.f32.mxu0 0.0
        %1103 = vmatmul.mubr.f32.gmra.mrb[0].mxu0 %v313
        %v1104 = vpop.f32.mrb[0].mxu0
        %v1105 = vadd.f32 0.0, %v1104
        %v1106 = vpop.f32.mrb[0].mxu0
        %v1107 = vadd.f32 0.0, %v1106
        %1108 = vmatprep.mubr.f32.mxu0 0.0
        %1109 = vmatmul.mubr.f32.gmra.mrb[0].mxu0 %v316
        %v1110 = vpop.f32.mrb[0].mxu0
        %v1111 = vadd.f32 0.0, %v1110
        %v1112 = vpop.f32.mrb[0].mxu0
        %v1113 = vadd.f32 0.0, %v1112
        %1114 = vmatprep.mubr.f32.mxu0 0.0
        %1115 = vmatmul.mubr.f32.gmra.mrb[0].mxu0 %v319
        %v1116 = vpop.f32.mrb[0].mxu0
        %v1117 = vadd.f32 0.0, %v1116
        %v1118 = vpop.f32.mrb[0].mxu0
        %v1119 = vadd.f32 0.0, %v1118
        %1120 = vmatprep.mubr.f32.mxu0 0.0
        %1121 = vmatmul.mubr.f32.gmra.mrb[0].mxu0 %v322
        %v1122 = vpop.f32.mrb[0].mxu0
        %v1123 = vadd.f32 0.0, %v1122
        %v1124 = vpop.f32.mrb[0].mxu0
        %v1125 = vadd.f32 0.0, %v1124
        %1126 = vmatprep.mubr.f32.mxu0 0.0
        %1127 = vmatmul.mubr.f32.gmra.mrb[0].mxu0 %v325
        %v1128 = vpop.f32.mrb[0].mxu0
        %v1129 = vadd.f32 0.0, %v1128
        %v1130 = vpop.f32.mrb[0].mxu0
        %v1131 = vadd.f32 0.0, %v1130
        %1132 = vmatprep.mubr.f32.mxu0 0.0
        %1133 = vmatmul.mubr.f32.gmra.mrb[0].mxu0 %v328
        %v1134 = vpop.f32.mrb[0].mxu0
        %v1135 = vadd.f32 0.0, %v1134
        %v1136 = vpop.f32.mrb[0].mxu0
        %v1137 = vadd.f32 0.0, %v1136
        %1138 = vmatprep.mubr.f32.mxu0 0.0
        %1139 = vmatmul.mubr.f32.gmra.mrb[0].mxu0 %v331
        %v1140 = vpop.f32.mrb[0].mxu0
        %v1141 = vadd.f32 0.0, %v1140
        %v1142 = vpop.f32.mrb[0].mxu0
        %v1143 = vadd.f32 0.0, %v1142
        %1144 = vmatprep.mubr.f32.mxu0 0.0
        %1145 = vmatmul.mubr.f32.gmra.mrb[0].mxu0 %v334
        %v1146 = vpop.f32.mrb[0].mxu0
        %v1147 = vadd.f32 0.0, %v1146
        %v1148 = vpop.f32.mrb[0].mxu0
        %v1149 = vadd.f32 0.0, %v1148
        %1150 = vmatprep.mubr.f32.mxu0 0.0
        %1151 = vmatmul.mubr.f32.gmra.mrb[0].mxu0 %v337
        %v1152 = vpop.f32.mrb[0].mxu0
        %v1153 = vadd.f32 0.0, %v1152
        %v1154 = vpop.f32.mrb[0].mxu0
        %v1155 = vadd.f32 0.0, %v1154
        %1156 = vmatprep.mubr.f32.mxu0 0.0
        %1157 = vmatmul.mubr.f32.gmra.mrb[0].mxu0 %v340
        %v1158 = vpop.f32.mrb[0].mxu0
        %v1159 = vadd.f32 0.0, %v1158
        %v1160 = vpop.f32.mrb[0].mxu0
        %v1161 = vadd.f32 0.0, %v1160
        %1162 = vmatprep.mubr.f32.mxu0 0.0
        %1163 = vmatmul.mubr.f32.gmra.mrb[0].mxu0 %v343
        %v1164 = vpop.f32.mrb[0].mxu0
        %v1165 = vadd.f32 0.0, %v1164
        %v1166 = vpop.f32.mrb[0].mxu0
        %v1167 = vadd.f32 0.0, %v1166
        %1168 = vmatprep.mubr.f32.mxu0 0.0
        %1169 = vmatmul.mubr.f32.gmra.mrb[0].mxu0 %v346
        %v1170 = vpop.f32.mrb[0].mxu0
        %v1171 = vadd.f32 0.0, %v1170
        %v1172 = vpop.f32.mrb[0].mxu0
        %v1173 = vadd.f32 0.0, %v1172
        %1174 = vmatprep.mubr.f32.mxu0 0.0
        %1175 = vmatmul.mubr.f32.gmra.mrb[0].mxu0 %v349
        %v1176 = vpop.f32.mrb[0].mxu0
        %v1177 = vadd.f32 0.0, %v1176
        %v1178 = vpop.f32.mrb[0].mxu0
        %v1179 = vadd.f32 0.0, %v1178
        %1180 = vmatprep.mubr.f32.mxu0 0.0
        %1181 = vmatmul.mubr.f32.gmra.mrb[0].mxu0 %v352
        %v1182 = vpop.f32.mrb[0].mxu0
        %v1183 = vadd.f32 0.0, %v1182
        %v1184 = vpop.f32.mrb[0].mxu0
        %v1185 = vadd.f32 0.0, %v1184
        %1186 = vmatprep.mubr.f32.mxu0 0.0
        %1187 = vmatmul.mubr.f32.gmra.mrb[0].mxu0 %v355
        %v1188 = vpop.f32.mrb[0].mxu0
        %v1189 = vadd.f32 0.0, %v1188
        %v1190 = vpop.f32.mrb[0].mxu0
        %v1191 = vadd.f32 0.0, %v1190
        %1192 = vdwg.mxu0
        %1193 = vmatprep.subr.mxu0 %v197
        %1194 = vmatpush1.msra.mxu0 %v196
        %1195 = vmatprep.subr.mxu0 %v209
        %1196 = vmatpush1.msra.mxu0 %v208
        %1197 = vmatprep.subr.mxu0 %v221
        %1198 = vmatpush1.msra.mxu0 %v220
        %1199 = vmatprep.subr.mxu0 %v233
        %1200 = vmatpush1.msra.mxu0 %v232
        %1201 = vmatprep.subr.mxu0 %v245
        %1202 = vmatpush1.msra.mxu0 %v244
        %1203 = vmatprep.subr.mxu0 %v257
        %1204 = vmatpush1.msra.mxu0 %v256
        %1205 = vmatprep.subr.mxu0 %v269
        %1206 = vmatpush1.msra.mxu0 %v268
        %1207 = vmatprep.subr.mxu0 %v281
        %1208 = vmatpush1.msra.mxu0 %v280
        %1209 = vmatprep.subr.mxu0 0.0
        %1210 = vmatpush1.msra.mxu0 0.0
        %1211 = vmatprep.subr.mxu0 0.0
        %1212 = vmatpush1.msra.mxu0 0.0
        %1213 = vmatprep.subr.mxu0 0.0
        %1214 = vmatpush1.msra.mxu0 0.0
        %1215 = vmatprep.subr.mxu0 0.0
        %1216 = vmatpush1.msra.mxu0 0.0
        %1217 = vmatprep.subr.mxu0 0.0
        %1218 = vmatpush1.msra.mxu0 0.0
        %1219 = vmatprep.subr.mxu0 0.0
        %1220 = vmatpush1.msra.mxu0 0.0
        %1221 = vmatprep.subr.mxu0 0.0
        %1222 = vmatpush1.msra.mxu0 0.0
        %1223 = vmatprep.subr.mxu0 0.0
        %1224 = vmatpush1.msra.mxu0 0.0
        %1225 = vmatprep.subr.mxu0 0.0
        %1226 = vmatpush1.msra.mxu0 0.0
        %1227 = vmatprep.subr.mxu0 0.0
        %1228 = vmatpush1.msra.mxu0 0.0
        %1229 = vmatprep.subr.mxu0 0.0
        %1230 = vmatpush1.msra.mxu0 0.0
        %1231 = vmatprep.subr.mxu0 0.0
        %1232 = vmatpush1.msra.mxu0 0.0
        %1233 = vmatprep.subr.mxu0 0.0
        %1234 = vmatpush1.msra.mxu0 0.0
        %1235 = vmatprep.subr.mxu0 0.0
        %1236 = vmatpush1.msra.mxu0 0.0
        %1237 = vmatprep.subr.mxu0 0.0
        %1238 = vmatpush1.msra.mxu0 0.0
        %1239 = vmatprep.subr.mxu0 0.0
        %1240 = vmatpush1.msra.mxu0 0.0
        %1241 = vmatprep.subr.mxu0 0.0
        %1242 = vmatpush1.msra.mxu0 0.0
        %1243 = vmatprep.subr.mxu0 0.0
        %1244 = vmatpush1.msra.mxu0 0.0
        %1245 = vmatprep.subr.mxu0 0.0
        %1246 = vmatpush1.msra.mxu0 0.0
        %1247 = vmatprep.subr.mxu0 0.0
        %1248 = vmatpush1.msra.mxu0 0.0
        %1249 = vmatprep.subr.mxu0 0.0
        %1250 = vmatpush1.msra.mxu0 0.0
        %1251 = vmatprep.subr.mxu0 0.0
        %1252 = vmatpush1.msra.mxu0 0.0
        %1253 = vmatprep.subr.mxu0 0.0
        %1254 = vmatpush1.msra.mxu0 0.0
        %1255 = vmatprep.subr.mxu0 0.0
        %1256 = vmatpush1.msra.mxu0 0.0
        %1257 = vmatprep.mubr.f32.mxu0 0.0
        %1258 = vmatmul.mubr.f32.gmra.mrb[0].mxu0 %v286
        %v1259 = vpop.f32.mrb[0].mxu0
        %v1260 = vadd.f32 0.0, %v1259
        %v1261 = vpop.f32.mrb[0].mxu0
        %v1262 = vadd.f32 0.0, %v1261
        %1263 = vmatprep.mubr.f32.mxu0 0.0
        %1264 = vmatmul.mubr.f32.gmra.mrb[0].mxu0 %v289
        %v1265 = vpop.f32.mrb[0].mxu0
        %v1266 = vadd.f32 0.0, %v1265
        %v1267 = vpop.f32.mrb[0].mxu0
        %v1268 = vadd.f32 0.0, %v1267
        %1269 = vmatprep.mubr.f32.mxu0 0.0
        %1270 = vmatmul.mubr.f32.gmra.mrb[0].mxu0 %v292
        %v1271 = vpop.f32.mrb[0].mxu0
        %v1272 = vadd.f32 0.0, %v1271
        %v1273 = vpop.f32.mrb[0].mxu0
        %v1274 = vadd.f32 0.0, %v1273
        %1275 = vmatprep.mubr.f32.mxu0 0.0
        %1276 = vmatmul.mubr.f32.gmra.mrb[0].mxu0 %v295
        %v1277 = vpop.f32.mrb[0].mxu0
        %v1278 = vadd.f32 0.0, %v1277
        %v1279 = vpop.f32.mrb[0].mxu0
        %v1280 = vadd.f32 0.0, %v1279
        %1281 = vmatprep.mubr.f32.mxu0 0.0
        %1282 = vmatmul.mubr.f32.gmra.mrb[0].mxu0 %v298
        %v1283 = vpop.f32.mrb[0].mxu0
        %v1284 = vadd.f32 0.0, %v1283
        %v1285 = vpop.f32.mrb[0].mxu0
        %v1286 = vadd.f32 0.0, %v1285
        %1287 = vmatprep.mubr.f32.mxu0 0.0
        %1288 = vmatmul.mubr.f32.gmra.mrb[0].mxu0 %v301
        %v1289 = vpop.f32.mrb[0].mxu0
        %v1290 = vadd.f32 0.0, %v1289
        %v1291 = vpop.f32.mrb[0].mxu0
        %v1292 = vadd.f32 0.0, %v1291
        %1293 = vmatprep.mubr.f32.mxu0 0.0
        %1294 = vmatmul.mubr.f32.gmra.mrb[0].mxu0 %v304
        %v1295 = vpop.f32.mrb[0].mxu0
        %v1296 = vadd.f32 0.0, %v1295
        %v1297 = vpop.f32.mrb[0].mxu0
        %v1298 = vadd.f32 0.0, %v1297
        %1299 = vmatprep.mubr.f32.mxu0 0.0
        %1300 = vmatmul.mubr.f32.gmra.mrb[0].mxu0 %v307
        %v1301 = vpop.f32.mrb[0].mxu0
        %v1302 = vadd.f32 0.0, %v1301
        %v1303 = vpop.f32.mrb[0].mxu0
        %v1304 = vadd.f32 0.0, %v1303
        %1305 = vmatprep.mubr.f32.mxu0 0.0
        %1306 = vmatmul.mubr.f32.gmra.mrb[0].mxu0 %v310
        %v1307 = vpop.f32.mrb[0].mxu0
        %v1308 = vadd.f32 0.0, %v1307
        %v1309 = vpop.f32.mrb[0].mxu0
        %v1310 = vadd.f32 0.0, %v1309
        %1311 = vmatprep.mubr.f32.mxu0 0.0
        %1312 = vmatmul.mubr.f32.gmra.mrb[0].mxu0 %v313
        %v1313 = vpop.f32.mrb[0].mxu0
        %v1314 = vadd.f32 0.0, %v1313
        %v1315 = vpop.f32.mrb[0].mxu0
        %v1316 = vadd.f32 0.0, %v1315
        %1317 = vmatprep.mubr.f32.mxu0 0.0
        %1318 = vmatmul.mubr.f32.gmra.mrb[0].mxu0 %v316
        %v1319 = vpop.f32.mrb[0].mxu0
        %v1320 = vadd.f32 0.0, %v1319
        %v1321 = vpop.f32.mrb[0].mxu0
        %v1322 = vadd.f32 0.0, %v1321
        %1323 = vmatprep.mubr.f32.mxu0 0.0
        %1324 = vmatmul.mubr.f32.gmra.mrb[0].mxu0 %v319
        %v1325 = vpop.f32.mrb[0].mxu0
        %v1326 = vadd.f32 0.0, %v1325
        %v1327 = vpop.f32.mrb[0].mxu0
        %v1328 = vadd.f32 0.0, %v1327
        %1329 = vmatprep.mubr.f32.mxu0 0.0
        %1330 = vmatmul.mubr.f32.gmra.mrb[0].mxu0 %v322
        %v1331 = vpop.f32.mrb[0].mxu0
        %v1332 = vadd.f32 0.0, %v1331
        %v1333 = vpop.f32.mrb[0].mxu0
        %v1334 = vadd.f32 0.0, %v1333
        %1335 = vmatprep.mubr.f32.mxu0 0.0
        %1336 = vmatmul.mubr.f32.gmra.mrb[0].mxu0 %v325
        %v1337 = vpop.f32.mrb[0].mxu0
        %v1338 = vadd.f32 0.0, %v1337
        %v1339 = vpop.f32.mrb[0].mxu0
        %v1340 = vadd.f32 0.0, %v1339
        %1341 = vmatprep.mubr.f32.mxu0 0.0
        %1342 = vmatmul.mubr.f32.gmra.mrb[0].mxu0 %v328
        %v1343 = vpop.f32.mrb[0].mxu0
        %v1344 = vadd.f32 0.0, %v1343
        %v1345 = vpop.f32.mrb[0].mxu0
        %v1346 = vadd.f32 0.0, %v1345
        %1347 = vmatprep.mubr.f32.mxu0 0.0
        %1348 = vmatmul.mubr.f32.gmra.mrb[0].mxu0 %v331
        %v1349 = vpop.f32.mrb[0].mxu0
        %v1350 = vadd.f32 0.0, %v1349
        %v1351 = vpop.f32.mrb[0].mxu0
        %v1352 = vadd.f32 0.0, %v1351
        %1353 = vmatprep.mubr.f32.mxu0 0.0
        %1354 = vmatmul.mubr.f32.gmra.mrb[0].mxu0 %v334
        %v1355 = vpop.f32.mrb[0].mxu0
        %v1356 = vadd.f32 0.0, %v1355
        %v1357 = vpop.f32.mrb[0].mxu0
        %v1358 = vadd.f32 0.0, %v1357
        %1359 = vmatprep.mubr.f32.mxu0 0.0
        %1360 = vmatmul.mubr.f32.gmra.mrb[0].mxu0 %v337
        %v1361 = vpop.f32.mrb[0].mxu0
        %v1362 = vadd.f32 0.0, %v1361
        %v1363 = vpop.f32.mrb[0].mxu0
        %v1364 = vadd.f32 0.0, %v1363
        %1365 = vmatprep.mubr.f32.mxu0 0.0
        %1366 = vmatmul.mubr.f32.gmra.mrb[0].mxu0 %v340
        %v1367 = vpop.f32.mrb[0].mxu0
        %v1368 = vadd.f32 0.0, %v1367
        %v1369 = vpop.f32.mrb[0].mxu0
        %v1370 = vadd.f32 0.0, %v1369
        %1371 = vmatprep.mubr.f32.mxu0 0.0
        %1372 = vmatmul.mubr.f32.gmra.mrb[0].mxu0 %v343
        %v1373 = vpop.f32.mrb[0].mxu0
        %v1374 = vadd.f32 0.0, %v1373
        %v1375 = vpop.f32.mrb[0].mxu0
        %v1376 = vadd.f32 0.0, %v1375
        %1377 = vmatprep.mubr.f32.mxu0 0.0
        %1378 = vmatmul.mubr.f32.gmra.mrb[0].mxu0 %v346
        %v1379 = vpop.f32.mrb[0].mxu0
        %v1380 = vadd.f32 0.0, %v1379
        %v1381 = vpop.f32.mrb[0].mxu0
        %v1382 = vadd.f32 0.0, %v1381
        %1383 = vmatprep.mubr.f32.mxu0 0.0
        %1384 = vmatmul.mubr.f32.gmra.mrb[0].mxu0 %v349
        %v1385 = vpop.f32.mrb[0].mxu0
        %v1386 = vadd.f32 0.0, %v1385
        %v1387 = vpop.f32.mrb[0].mxu0
        %v1388 = vadd.f32 0.0, %v1387
        %1389 = vmatprep.mubr.f32.mxu0 0.0
        %1390 = vmatmul.mubr.f32.gmra.mrb[0].mxu0 %v352
        %v1391 = vpop.f32.mrb[0].mxu0
        %v1392 = vadd.f32 0.0, %v1391
        %v1393 = vpop.f32.mrb[0].mxu0
        %v1394 = vadd.f32 0.0, %v1393
        %1395 = vmatprep.mubr.f32.mxu0 0.0
        %1396 = vmatmul.mubr.f32.gmra.mrb[0].mxu0 %v355
        %v1397 = vpop.f32.mrb[0].mxu0
        %v1398 = vadd.f32 0.0, %v1397
        %v1399 = vpop.f32.mrb[0].mxu0
        %v1400 = vadd.f32 0.0, %v1399
        %1401 = vdwg.mxu0
        %1402 = vmatprep.subr.mxu0 %v199
        %1403 = vmatpush1.msra.mxu0 %v198
        %1404 = vmatprep.subr.mxu0 %v211
        %1405 = vmatpush1.msra.mxu0 %v210
        %1406 = vmatprep.subr.mxu0 %v223
        %1407 = vmatpush1.msra.mxu0 %v222
        %1408 = vmatprep.subr.mxu0 %v235
        %1409 = vmatpush1.msra.mxu0 %v234
        %1410 = vmatprep.subr.mxu0 %v247
        %1411 = vmatpush1.msra.mxu0 %v246
        %1412 = vmatprep.subr.mxu0 %v259
        %1413 = vmatpush1.msra.mxu0 %v258
        %1414 = vmatprep.subr.mxu0 %v271
        %1415 = vmatpush1.msra.mxu0 %v270
        %1416 = vmatprep.subr.mxu0 %v283
        %1417 = vmatpush1.msra.mxu0 %v282
        %1418 = vmatprep.subr.mxu0 0.0
        %1419 = vmatpush1.msra.mxu0 0.0
        %1420 = vmatprep.subr.mxu0 0.0
        %1421 = vmatpush1.msra.mxu0 0.0
        %1422 = vmatprep.subr.mxu0 0.0
        %1423 = vmatpush1.msra.mxu0 0.0
        %1424 = vmatprep.subr.mxu0 0.0
        %1425 = vmatpush1.msra.mxu0 0.0
        %1426 = vmatprep.subr.mxu0 0.0
        %1427 = vmatpush1.msra.mxu0 0.0
        %1428 = vmatprep.subr.mxu0 0.0
        %1429 = vmatpush1.msra.mxu0 0.0
        %1430 = vmatprep.subr.mxu0 0.0
        %1431 = vmatpush1.msra.mxu0 0.0
        %1432 = vmatprep.subr.mxu0 0.0
        %1433 = vmatpush1.msra.mxu0 0.0
        %1434 = vmatprep.subr.mxu0 0.0
        %1435 = vmatpush1.msra.mxu0 0.0
        %1436 = vmatprep.subr.mxu0 0.0
        %1437 = vmatpush1.msra.mxu0 0.0
        %1438 = vmatprep.subr.mxu0 0.0
        %1439 = vmatpush1.msra.mxu0 0.0
        %1440 = vmatprep.subr.mxu0 0.0
        %1441 = vmatpush1.msra.mxu0 0.0
        %1442 = vmatprep.subr.mxu0 0.0
        %1443 = vmatpush1.msra.mxu0 0.0
        %1444 = vmatprep.subr.mxu0 0.0
        %1445 = vmatpush1.msra.mxu0 0.0
        %1446 = vmatprep.subr.mxu0 0.0
        %1447 = vmatpush1.msra.mxu0 0.0
        %1448 = vmatprep.subr.mxu0 0.0
        %1449 = vmatpush1.msra.mxu0 0.0
        %1450 = vmatprep.subr.mxu0 0.0
        %1451 = vmatpush1.msra.mxu0 0.0
        %1452 = vmatprep.subr.mxu0 0.0
        %1453 = vmatpush1.msra.mxu0 0.0
        %1454 = vmatprep.subr.mxu0 0.0
        %1455 = vmatpush1.msra.mxu0 0.0
        %1456 = vmatprep.subr.mxu0 0.0
        %1457 = vmatpush1.msra.mxu0 0.0
        %1458 = vmatprep.subr.mxu0 0.0
        %1459 = vmatpush1.msra.mxu0 0.0
        %1460 = vmatprep.subr.mxu0 0.0
        %1461 = vmatpush1.msra.mxu0 0.0
        %1462 = vmatprep.subr.mxu0 0.0
        %1463 = vmatpush1.msra.mxu0 0.0
        %1464 = vmatprep.subr.mxu0 0.0
        %1465 = vmatpush1.msra.mxu0 0.0
        %1466 = vmatprep.mubr.f32.mxu0 0.0
        %1467 = vmatmul.mubr.f32.gmra.mrb[0].mxu0 %v286
        %v1468 = vpop.f32.mrb[0].mxu0
        %v1469 = vadd.f32 0.0, %v1468
        %v1470 = vpop.f32.mrb[0].mxu0
        %v1471 = vadd.f32 0.0, %v1470
        %1472 = vmatprep.mubr.f32.mxu0 0.0
        %1473 = vmatmul.mubr.f32.gmra.mrb[0].mxu0 %v289
        %v1474 = vpop.f32.mrb[0].mxu0
        %v1475 = vadd.f32 0.0, %v1474
        %v1476 = vpop.f32.mrb[0].mxu0
        %v1477 = vadd.f32 0.0, %v1476
        %1478 = vmatprep.mubr.f32.mxu0 0.0
        %1479 = vmatmul.mubr.f32.gmra.mrb[0].mxu0 %v292
        %v1480 = vpop.f32.mrb[0].mxu0
        %v1481 = vadd.f32 0.0, %v1480
        %v1482 = vpop.f32.mrb[0].mxu0
        %v1483 = vadd.f32 0.0, %v1482
        %1484 = vmatprep.mubr.f32.mxu0 0.0
        %1485 = vmatmul.mubr.f32.gmra.mrb[0].mxu0 %v295
        %v1486 = vpop.f32.mrb[0].mxu0
        %v1487 = vadd.f32 0.0, %v1486
        %v1488 = vpop.f32.mrb[0].mxu0
        %v1489 = vadd.f32 0.0, %v1488
        %1490 = vmatprep.mubr.f32.mxu0 0.0
        %1491 = vmatmul.mubr.f32.gmra.mrb[0].mxu0 %v298
        %v1492 = vpop.f32.mrb[0].mxu0
        %v1493 = vadd.f32 0.0, %v1492
        %v1494 = vpop.f32.mrb[0].mxu0
        %v1495 = vadd.f32 0.0, %v1494
        %1496 = vmatprep.mubr.f32.mxu0 0.0
        %1497 = vmatmul.mubr.f32.gmra.mrb[0].mxu0 %v301
        %v1498 = vpop.f32.mrb[0].mxu0
        %v1499 = vadd.f32 0.0, %v1498
        %v1500 = vpop.f32.mrb[0].mxu0
        %v1501 = vadd.f32 0.0, %v1500
        %1502 = vmatprep.mubr.f32.mxu0 0.0
        %1503 = vmatmul.mubr.f32.gmra.mrb[0].mxu0 %v304
        %v1504 = vpop.f32.mrb[0].mxu0
        %v1505 = vadd.f32 0.0, %v1504
        %v1506 = vpop.f32.mrb[0].mxu0
        %v1507 = vadd.f32 0.0, %v1506
        %1508 = vmatprep.mubr.f32.mxu0 0.0
        %1509 = vmatmul.mubr.f32.gmra.mrb[0].mxu0 %v307
        %v1510 = vpop.f32.mrb[0].mxu0
        %v1511 = vadd.f32 0.0, %v1510
        %v1512 = vpop.f32.mrb[0].mxu0
        %v1513 = vadd.f32 0.0, %v1512
        %1514 = vmatprep.mubr.f32.mxu0 0.0
        %1515 = vmatmul.mubr.f32.gmra.mrb[0].mxu0 %v310
        %v1516 = vpop.f32.mrb[0].mxu0
        %v1517 = vadd.f32 0.0, %v1516
        %v1518 = vpop.f32.mrb[0].mxu0
        %v1519 = vadd.f32 0.0, %v1518
        %1520 = vmatprep.mubr.f32.mxu0 0.0
        %1521 = vmatmul.mubr.f32.gmra.mrb[0].mxu0 %v313
        %v1522 = vpop.f32.mrb[0].mxu0
        %v1523 = vadd.f32 0.0, %v1522
        %v1524 = vpop.f32.mrb[0].mxu0
        %v1525 = vadd.f32 0.0, %v1524
        %1526 = vmatprep.mubr.f32.mxu0 0.0
        %1527 = vmatmul.mubr.f32.gmra.mrb[0].mxu0 %v316
        %v1528 = vpop.f32.mrb[0].mxu0
        %v1529 = vadd.f32 0.0, %v1528
        %v1530 = vpop.f32.mrb[0].mxu0
        %v1531 = vadd.f32 0.0, %v1530
        %1532 = vmatprep.mubr.f32.mxu0 0.0
        %1533 = vmatmul.mubr.f32.gmra.mrb[0].mxu0 %v319
        %v1534 = vpop.f32.mrb[0].mxu0
        %v1535 = vadd.f32 0.0, %v1534
        %v1536 = vpop.f32.mrb[0].mxu0
        %v1537 = vadd.f32 0.0, %v1536
        %1538 = vmatprep.mubr.f32.mxu0 0.0
        %1539 = vmatmul.mubr.f32.gmra.mrb[0].mxu0 %v322
        %v1540 = vpop.f32.mrb[0].mxu0
        %v1541 = vadd.f32 0.0, %v1540
        %v1542 = vpop.f32.mrb[0].mxu0
        %v1543 = vadd.f32 0.0, %v1542
        %1544 = vmatprep.mubr.f32.mxu0 0.0
        %1545 = vmatmul.mubr.f32.gmra.mrb[0].mxu0 %v325
        %v1546 = vpop.f32.mrb[0].mxu0
        %v1547 = vadd.f32 0.0, %v1546
        %v1548 = vpop.f32.mrb[0].mxu0
        %v1549 = vadd.f32 0.0, %v1548
        %1550 = vmatprep.mubr.f32.mxu0 0.0
        %1551 = vmatmul.mubr.f32.gmra.mrb[0].mxu0 %v328
        %v1552 = vpop.f32.mrb[0].mxu0
        %v1553 = vadd.f32 0.0, %v1552
        %v1554 = vpop.f32.mrb[0].mxu0
        %v1555 = vadd.f32 0.0, %v1554
        %1556 = vmatprep.mubr.f32.mxu0 0.0
        %1557 = vmatmul.mubr.f32.gmra.mrb[0].mxu0 %v331
        %v1558 = vpop.f32.mrb[0].mxu0
        %v1559 = vadd.f32 0.0, %v1558
        %v1560 = vpop.f32.mrb[0].mxu0
        %v1561 = vadd.f32 0.0, %v1560
        %1562 = vmatprep.mubr.f32.mxu0 0.0
        %1563 = vmatmul.mubr.f32.gmra.mrb[0].mxu0 %v334
        %v1564 = vpop.f32.mrb[0].mxu0
        %v1565 = vadd.f32 0.0, %v1564
        %v1566 = vpop.f32.mrb[0].mxu0
        %v1567 = vadd.f32 0.0, %v1566
        %1568 = vmatprep.mubr.f32.mxu0 0.0
        %1569 = vmatmul.mubr.f32.gmra.mrb[0].mxu0 %v337
        %v1570 = vpop.f32.mrb[0].mxu0
        %v1571 = vadd.f32 0.0, %v1570
        %v1572 = vpop.f32.mrb[0].mxu0
        %v1573 = vadd.f32 0.0, %v1572
        %1574 = vmatprep.mubr.f32.mxu0 0.0
        %1575 = vmatmul.mubr.f32.gmra.mrb[0].mxu0 %v340
        %v1576 = vpop.f32.mrb[0].mxu0
        %v1577 = vadd.f32 0.0, %v1576
        %v1578 = vpop.f32.mrb[0].mxu0
        %v1579 = vadd.f32 0.0, %v1578
        %1580 = vmatprep.mubr.f32.mxu0 0.0
        %1581 = vmatmul.mubr.f32.gmra.mrb[0].mxu0 %v343
        %v1582 = vpop.f32.mrb[0].mxu0
        %v1583 = vadd.f32 0.0, %v1582
        %v1584 = vpop.f32.mrb[0].mxu0
        %v1585 = vadd.f32 0.0, %v1584
        %1586 = vmatprep.mubr.f32.mxu0 0.0
        %1587 = vmatmul.mubr.f32.gmra.mrb[0].mxu0 %v346
        %v1588 = vpop.f32.mrb[0].mxu0
        %v1589 = vadd.f32 0.0, %v1588
        %v1590 = vpop.f32.mrb[0].mxu0
        %v1591 = vadd.f32 0.0, %v1590
        %1592 = vmatprep.mubr.f32.mxu0 0.0
        %1593 = vmatmul.mubr.f32.gmra.mrb[0].mxu0 %v349
        %v1594 = vpop.f32.mrb[0].mxu0
        %v1595 = vadd.f32 0.0, %v1594
        %v1596 = vpop.f32.mrb[0].mxu0
        %v1597 = vadd.f32 0.0, %v1596
        %1598 = vmatprep.mubr.f32.mxu0 0.0
        %1599 = vmatmul.mubr.f32.gmra.mrb[0].mxu0 %v352
        %v1600 = vpop.f32.mrb[0].mxu0
        %v1601 = vadd.f32 0.0, %v1600
        %v1602 = vpop.f32.mrb[0].mxu0
        %v1603 = vadd.f32 0.0, %v1602
        %1604 = vmatprep.mubr.f32.mxu0 0.0
        %1605 = vmatmul.mubr.f32.gmra.mrb[0].mxu0 %v355
        %v1606 = vpop.f32.mrb[0].mxu0
        %v1607 = vadd.f32 0.0, %v1606
        %v1608 = vpop.f32.mrb[0].mxu0
        %v1609 = vadd.f32 0.0, %v1608
        %1610 = vdwg.mxu0
        %v1611 = vmin.f32 %v424, 0.7
        %v1612 = vmin.f32 %v426, 0.7
        %v1613 = vmin.f32 %v633, 0.7
        %v1614 = vmin.f32 %v635, 0.7
        %v1615 = vmin.f32 %v842, 0.7
        %v1616 = vmin.f32 %v844, 0.7
        %v1617 = vmin.f32 %v1051, 0.7
        %v1618 = vmin.f32 %v1053, 0.7
        %v1619 = vmin.f32 %v1260, 0.7
        %v1620 = vmin.f32 %v1262, 0.7
        %v1621 = vmin.f32 %v1469, 0.7
        %v1622 = vmin.f32 %v1471, 0.7
        %v1623 = vmin.f32 %v430, 0.7
        %v1624 = vmin.f32 %v432, 0.7
        %v1625 = vmin.f32 %v639, 0.7
        %v1626 = vmin.f32 %v641, 0.7
        %v1627 = vmin.f32 %v848, 0.7
        %v1628 = vmin.f32 %v850, 0.7
        %v1629 = vmin.f32 %v1057, 0.7
        %v1630 = vmin.f32 %v1059, 0.7
        %v1631 = vmin.f32 %v1266, 0.7
        %v1632 = vmin.f32 %v1268, 0.7
        %v1633 = vmin.f32 %v1475, 0.7
        %v1634 = vmin.f32 %v1477, 0.7
        %v1635 = vmin.f32 %v436, 0.7
        %v1636 = vmin.f32 %v438, 0.7
        %v1637 = vmin.f32 %v645, 0.7
        %v1638 = vmin.f32 %v647, 0.7
        %v1639 = vmin.f32 %v854, 0.7
        %v1640 = vmin.f32 %v856, 0.7
        %v1641 = vmin.f32 %v1063, 0.7
        %v1642 = vmin.f32 %v1065, 0.7
        %v1643 = vmin.f32 %v1272, 0.7
        %v1644 = vmin.f32 %v1274, 0.7
        %v1645 = vmin.f32 %v1481, 0.7
        %v1646 = vmin.f32 %v1483, 0.7
        %v1647 = vmin.f32 %v442, 0.7
        %v1648 = vmin.f32 %v444, 0.7
        %v1649 = vmin.f32 %v651, 0.7
        %v1650 = vmin.f32 %v653, 0.7
        %v1651 = vmin.f32 %v860, 0.7
        %v1652 = vmin.f32 %v862, 0.7
        %v1653 = vmin.f32 %v1069, 0.7
        %v1654 = vmin.f32 %v1071, 0.7
        %v1655 = vmin.f32 %v1278, 0.7
        %v1656 = vmin.f32 %v1280, 0.7
        %v1657 = vmin.f32 %v1487, 0.7
        %v1658 = vmin.f32 %v1489, 0.7
        %v1659 = vmin.f32 %v448, 0.7
        %v1660 = vmin.f32 %v450, 0.7
        %v1661 = vmin.f32 %v657, 0.7
        %v1662 = vmin.f32 %v659, 0.7
        %v1663 = vmin.f32 %v866, 0.7
        %v1664 = vmin.f32 %v868, 0.7
        %v1665 = vmin.f32 %v1075, 0.7
        %v1666 = vmin.f32 %v1077, 0.7
        %v1667 = vmin.f32 %v1284, 0.7
        %v1668 = vmin.f32 %v1286, 0.7
        %v1669 = vmin.f32 %v1493, 0.7
        %v1670 = vmin.f32 %v1495, 0.7
        %v1671 = vmin.f32 %v454, 0.7
        %v1672 = vmin.f32 %v456, 0.7
        %v1673 = vmin.f32 %v663, 0.7
        %v1674 = vmin.f32 %v665, 0.7
        %v1675 = vmin.f32 %v872, 0.7
        %v1676 = vmin.f32 %v874, 0.7
        %v1677 = vmin.f32 %v1081, 0.7
        %v1678 = vmin.f32 %v1083, 0.7
        %v1679 = vmin.f32 %v1290, 0.7
        %v1680 = vmin.f32 %v1292, 0.7
        %v1681 = vmin.f32 %v1499, 0.7
        %v1682 = vmin.f32 %v1501, 0.7
        %v1683 = vmin.f32 %v460, 0.7
        %v1684 = vmin.f32 %v462, 0.7
        %v1685 = vmin.f32 %v669, 0.7
        %v1686 = vmin.f32 %v671, 0.7
        %v1687 = vmin.f32 %v878, 0.7
        %v1688 = vmin.f32 %v880, 0.7
        %v1689 = vmin.f32 %v1087, 0.7
        %v1690 = vmin.f32 %v1089, 0.7
        %v1691 = vmin.f32 %v1296, 0.7
        %v1692 = vmin.f32 %v1298, 0.7
        %v1693 = vmin.f32 %v1505, 0.7
        %v1694 = vmin.f32 %v1507, 0.7
        %v1695 = vmin.f32 %v466, 0.7
        %v1696 = vmin.f32 %v468, 0.7
        %v1697 = vmin.f32 %v675, 0.7
        %v1698 = vmin.f32 %v677, 0.7
        %v1699 = vmin.f32 %v884, 0.7
        %v1700 = vmin.f32 %v886, 0.7
        %v1701 = vmin.f32 %v1093, 0.7
        %v1702 = vmin.f32 %v1095, 0.7
        %v1703 = vmin.f32 %v1302, 0.7
        %v1704 = vmin.f32 %v1304, 0.7
        %v1705 = vmin.f32 %v1511, 0.7
        %v1706 = vmin.f32 %v1513, 0.7
        %v1707 = vmin.f32 %v472, 0.7
        %v1708 = vmin.f32 %v474, 0.7
        %v1709 = vmin.f32 %v681, 0.7
        %v1710 = vmin.f32 %v683, 0.7
        %v1711 = vmin.f32 %v890, 0.7
        %v1712 = vmin.f32 %v892, 0.7
        %v1713 = vmin.f32 %v1099, 0.7
        %v1714 = vmin.f32 %v1101, 0.7
        %v1715 = vmin.f32 %v1308, 0.7
        %v1716 = vmin.f32 %v1310, 0.7
        %v1717 = vmin.f32 %v1517, 0.7
        %v1718 = vmin.f32 %v1519, 0.7
        %v1719 = vmin.f32 %v478, 0.7
        %v1720 = vmin.f32 %v480, 0.7
        %v1721 = vmin.f32 %v687, 0.7
        %v1722 = vmin.f32 %v689, 0.7
        %v1723 = vmin.f32 %v896, 0.7
        %v1724 = vmin.f32 %v898, 0.7
        %v1725 = vmin.f32 %v1105, 0.7
        %v1726 = vmin.f32 %v1107, 0.7
        %v1727 = vmin.f32 %v1314, 0.7
        %v1728 = vmin.f32 %v1316, 0.7
        %v1729 = vmin.f32 %v1523, 0.7
        %v1730 = vmin.f32 %v1525, 0.7
        %v1731 = vmin.f32 %v484, 0.7
        %v1732 = vmin.f32 %v486, 0.7
        %v1733 = vmin.f32 %v693, 0.7
        %v1734 = vmin.f32 %v695, 0.7
        %v1735 = vmin.f32 %v902, 0.7
        %v1736 = vmin.f32 %v904, 0.7
        %v1737 = vmin.f32 %v1111, 0.7
        %v1738 = vmin.f32 %v1113, 0.7
        %v1739 = vmin.f32 %v1320, 0.7
        %v1740 = vmin.f32 %v1322, 0.7
        %v1741 = vmin.f32 %v1529, 0.7
        %v1742 = vmin.f32 %v1531, 0.7
        %v1743 = vmin.f32 %v490, 0.7
        %v1744 = vmin.f32 %v492, 0.7
        %v1745 = vmin.f32 %v699, 0.7
        %v1746 = vmin.f32 %v701, 0.7
        %v1747 = vmin.f32 %v908, 0.7
        %v1748 = vmin.f32 %v910, 0.7
        %v1749 = vmin.f32 %v1117, 0.7
        %v1750 = vmin.f32 %v1119, 0.7
        %v1751 = vmin.f32 %v1326, 0.7
        %v1752 = vmin.f32 %v1328, 0.7
        %v1753 = vmin.f32 %v1535, 0.7
        %v1754 = vmin.f32 %v1537, 0.7
        %v1755 = vmin.f32 %v496, 0.7
        %v1756 = vmin.f32 %v498, 0.7
        %v1757 = vmin.f32 %v705, 0.7
        %v1758 = vmin.f32 %v707, 0.7
        %v1759 = vmin.f32 %v914, 0.7
        %v1760 = vmin.f32 %v916, 0.7
        %v1761 = vmin.f32 %v1123, 0.7
        %v1762 = vmin.f32 %v1125, 0.7
        %v1763 = vmin.f32 %v1332, 0.7
        %v1764 = vmin.f32 %v1334, 0.7
        %v1765 = vmin.f32 %v1541, 0.7
        %v1766 = vmin.f32 %v1543, 0.7
        %v1767 = vmin.f32 %v502, 0.7
        %v1768 = vmin.f32 %v504, 0.7
        %v1769 = vmin.f32 %v711, 0.7
        %v1770 = vmin.f32 %v713, 0.7
        %v1771 = vmin.f32 %v920, 0.7
        %v1772 = vmin.f32 %v922, 0.7
        %v1773 = vmin.f32 %v1129, 0.7
        %v1774 = vmin.f32 %v1131, 0.7
        %v1775 = vmin.f32 %v1338, 0.7
        %v1776 = vmin.f32 %v1340, 0.7
        %v1777 = vmin.f32 %v1547, 0.7
        %v1778 = vmin.f32 %v1549, 0.7
        %v1779 = vmin.f32 %v508, 0.7
        %v1780 = vmin.f32 %v510, 0.7
        %v1781 = vmin.f32 %v717, 0.7
        %v1782 = vmin.f32 %v719, 0.7
        %v1783 = vmin.f32 %v926, 0.7
        %v1784 = vmin.f32 %v928, 0.7
        %v1785 = vmin.f32 %v1135, 0.7
        %v1786 = vmin.f32 %v1137, 0.7
        %v1787 = vmin.f32 %v1344, 0.7
        %v1788 = vmin.f32 %v1346, 0.7
        %v1789 = vmin.f32 %v1553, 0.7
        %v1790 = vmin.f32 %v1555, 0.7
        %v1791 = vmin.f32 %v514, 0.7
        %v1792 = vmin.f32 %v516, 0.7
        %v1793 = vmin.f32 %v723, 0.7
        %v1794 = vmin.f32 %v725, 0.7
        %v1795 = vmin.f32 %v932, 0.7
        %v1796 = vmin.f32 %v934, 0.7
        %v1797 = vmin.f32 %v1141, 0.7
        %v1798 = vmin.f32 %v1143, 0.7
        %v1799 = vmin.f32 %v1350, 0.7
        %v1800 = vmin.f32 %v1352, 0.7
        %v1801 = vmin.f32 %v1559, 0.7
        %v1802 = vmin.f32 %v1561, 0.7
        %v1803 = vmin.f32 %v520, 0.7
        %v1804 = vmin.f32 %v522, 0.7
        %v1805 = vmin.f32 %v729, 0.7
        %v1806 = vmin.f32 %v731, 0.7
        %v1807 = vmin.f32 %v938, 0.7
        %v1808 = vmin.f32 %v940, 0.7
        %v1809 = vmin.f32 %v1147, 0.7
        %v1810 = vmin.f32 %v1149, 0.7
        %v1811 = vmin.f32 %v1356, 0.7
        %v1812 = vmin.f32 %v1358, 0.7
        %v1813 = vmin.f32 %v1565, 0.7
        %v1814 = vmin.f32 %v1567, 0.7
        %v1815 = vmin.f32 %v526, 0.7
        %v1816 = vmin.f32 %v528, 0.7
        %v1817 = vmin.f32 %v735, 0.7
        %v1818 = vmin.f32 %v737, 0.7
        %v1819 = vmin.f32 %v944, 0.7
        %v1820 = vmin.f32 %v946, 0.7
        %v1821 = vmin.f32 %v1153, 0.7
        %v1822 = vmin.f32 %v1155, 0.7
        %v1823 = vmin.f32 %v1362, 0.7
        %v1824 = vmin.f32 %v1364, 0.7
        %v1825 = vmin.f32 %v1571, 0.7
        %v1826 = vmin.f32 %v1573, 0.7
        %v1827 = vmin.f32 %v532, 0.7
        %v1828 = vmin.f32 %v534, 0.7
        %v1829 = vmin.f32 %v741, 0.7
        %v1830 = vmin.f32 %v743, 0.7
        %v1831 = vmin.f32 %v950, 0.7
        %v1832 = vmin.f32 %v952, 0.7
        %v1833 = vmin.f32 %v1159, 0.7
        %v1834 = vmin.f32 %v1161, 0.7
        %v1835 = vmin.f32 %v1368, 0.7
        %v1836 = vmin.f32 %v1370, 0.7
        %v1837 = vmin.f32 %v1577, 0.7
        %v1838 = vmin.f32 %v1579, 0.7
        %v1839 = vmin.f32 %v538, 0.7
        %v1840 = vmin.f32 %v540, 0.7
        %v1841 = vmin.f32 %v747, 0.7
        %v1842 = vmin.f32 %v749, 0.7
        %v1843 = vmin.f32 %v956, 0.7
        %v1844 = vmin.f32 %v958, 0.7
        %v1845 = vmin.f32 %v1165, 0.7
        %v1846 = vmin.f32 %v1167, 0.7
        %v1847 = vmin.f32 %v1374, 0.7
        %v1848 = vmin.f32 %v1376, 0.7
        %v1849 = vmin.f32 %v1583, 0.7
        %v1850 = vmin.f32 %v1585, 0.7
        %v1851 = vmin.f32 %v544, 0.7
        %v1852 = vmin.f32 %v546, 0.7
        %v1853 = vmin.f32 %v753, 0.7
        %v1854 = vmin.f32 %v755, 0.7
        %v1855 = vmin.f32 %v962, 0.7
        %v1856 = vmin.f32 %v964, 0.7
        %v1857 = vmin.f32 %v1171, 0.7
        %v1858 = vmin.f32 %v1173, 0.7
        %v1859 = vmin.f32 %v1380, 0.7
        %v1860 = vmin.f32 %v1382, 0.7
        %v1861 = vmin.f32 %v1589, 0.7
        %v1862 = vmin.f32 %v1591, 0.7
        %v1863 = vmin.f32 %v550, 0.7
        %v1864 = vmin.f32 %v552, 0.7
        %v1865 = vmin.f32 %v759, 0.7
        %v1866 = vmin.f32 %v761, 0.7
        %v1867 = vmin.f32 %v968, 0.7
        %v1868 = vmin.f32 %v970, 0.7
        %v1869 = vmin.f32 %v1177, 0.7
        %v1870 = vmin.f32 %v1179, 0.7
        %v1871 = vmin.f32 %v1386, 0.7
        %v1872 = vmin.f32 %v1388, 0.7
        %v1873 = vmin.f32 %v1595, 0.7
        %v1874 = vmin.f32 %v1597, 0.7
        %v1875 = vmin.f32 %v556, 0.7
        %v1876 = vmin.f32 %v558, 0.7
        %v1877 = vmin.f32 %v765, 0.7
        %v1878 = vmin.f32 %v767, 0.7
        %v1879 = vmin.f32 %v974, 0.7
        %v1880 = vmin.f32 %v976, 0.7
        %v1881 = vmin.f32 %v1183, 0.7
        %v1882 = vmin.f32 %v1185, 0.7
        %v1883 = vmin.f32 %v1392, 0.7
        %v1884 = vmin.f32 %v1394, 0.7
        %v1885 = vmin.f32 %v1601, 0.7
        %v1886 = vmin.f32 %v1603, 0.7
        %v1887 = vmin.f32 %v562, 0.7
        %v1888 = vmin.f32 %v564, 0.7
        %v1889 = vmin.f32 %v771, 0.7
        %v1890 = vmin.f32 %v773, 0.7
        %v1891 = vmin.f32 %v980, 0.7
        %v1892 = vmin.f32 %v982, 0.7
        %v1893 = vmin.f32 %v1189, 0.7
        %v1894 = vmin.f32 %v1191, 0.7
        %v1895 = vmin.f32 %v1398, 0.7
        %v1896 = vmin.f32 %v1400, 0.7
        %v1897 = vmin.f32 %v1607, 0.7
        %v1898 = vmin.f32 %v1609, 0.7
        %1899 = vst [vmem:[%s161] sm:$0xff] %v1611
        %1900 = vst [vmem:[%s161 + $0x8] sm:$0xff] %v1612
        %1901 = vst [vmem:[%s161 + $0x10] sm:$0xff] %v1613
        %1902 = vst [vmem:[%s161 + $0x18] sm:$0xff] %v1614
        %1903 = vst [vmem:[%s161 + $0x20] sm:$0xff] %v1615
        %1904 = vst [vmem:[%s161 + $0x28] sm:$0xff] %v1616
        %1905 = vst [vmem:[%s161 + $0x30] sm:$0xff] %v1617
        %1906 = vst [vmem:[%s161 + $0x38] sm:$0xff] %v1618
        %1907 = vst [vmem:[%s161 + $0x40] sm:$0xff] %v1619
        %1908 = vst [vmem:[%s161 + $0x48] sm:$0xff] %v1620
        %1909 = vst [vmem:[%s161 + $0x50] sm:$0xff] %v1621
        %1910 = vst [vmem:[%s161 + $0x58] sm:$0xff] %v1622
        %1911 = vst [vmem:[%s161 + $0x60] sm:$0xff] %v1623
        %1912 = vst [vmem:[%s161 + $0x68] sm:$0xff] %v1624
        %1913 = vst [vmem:[%s161 + $0x70] sm:$0xff] %v1625
        %1914 = vst [vmem:[%s161 + $0x78] sm:$0xff] %v1626
        %1915 = vst [vmem:[%s161 + $0x80] sm:$0xff] %v1627
        %1916 = vst [vmem:[%s161 + $0x88] sm:$0xff] %v1628
        %1917 = vst [vmem:[%s161 + $0x90] sm:$0xff] %v1629
        %1918 = vst [vmem:[%s161 + $0x98] sm:$0xff] %v1630
        %1919 = vst [vmem:[%s161 + $0xa0] sm:$0xff] %v1631
        %1920 = vst [vmem:[%s161 + $0xa8] sm:$0xff] %v1632
        %1921 = vst [vmem:[%s161 + $0xb0] sm:$0xff] %v1633
        %1922 = vst [vmem:[%s161 + $0xb8] sm:$0xff] %v1634
        %1923 = vst [vmem:[%s161 + $0xc0] sm:$0xff] %v1635
        %1924 = vst [vmem:[%s161 + $0xc8] sm:$0xff] %v1636
        %1925 = vst [vmem:[%s161 + $0xd0] sm:$0xff] %v1637
        %1926 = vst [vmem:[%s161 + $0xd8] sm:$0xff] %v1638
        %1927 = vst [vmem:[%s161 + $0xe0] sm:$0xff] %v1639
        %1928 = vst [vmem:[%s161 + $0xe8] sm:$0xff] %v1640
        %1929 = vst [vmem:[%s161 + $0xf0] sm:$0xff] %v1641
        %1930 = vst [vmem:[%s161 + $0xf8] sm:$0xff] %v1642
        %1931 = vst [vmem:[%s161 + $0x100] sm:$0xff] %v1643
        %1932 = vst [vmem:[%s161 + $0x108] sm:$0xff] %v1644
        %1933 = vst [vmem:[%s161 + $0x110] sm:$0xff] %v1645
        %1934 = vst [vmem:[%s161 + $0x118] sm:$0xff] %v1646
        %1935 = vst [vmem:[%s161 + $0x120] sm:$0xff] %v1647
        %1936 = vst [vmem:[%s161 + $0x128] sm:$0xff] %v1648
        %1937 = vst [vmem:[%s161 + $0x130] sm:$0xff] %v1649
        %1938 = vst [vmem:[%s161 + $0x138] sm:$0xff] %v1650
        %1939 = vst [vmem:[%s161 + $0x140] sm:$0xff] %v1651
        %1940 = vst [vmem:[%s161 + $0x148] sm:$0xff] %v1652
        %1941 = vst [vmem:[%s161 + $0x150] sm:$0xff] %v1653
        %1942 = vst [vmem:[%s161 + $0x158] sm:$0xff] %v1654
        %1943 = vst [vmem:[%s161 + $0x160] sm:$0xff] %v1655
        %1944 = vst [vmem:[%s161 + $0x168] sm:$0xff] %v1656
        %1945 = vst [vmem:[%s161 + $0x170] sm:$0xff] %v1657
        %1946 = vst [vmem:[%s161 + $0x178] sm:$0xff] %v1658
        %1947 = vst [vmem:[%s161 + $0x180] sm:$0xff] %v1659
        %1948 = vst [vmem:[%s161 + $0x188] sm:$0xff] %v1660
        %1949 = vst [vmem:[%s161 + $0x190] sm:$0xff] %v1661
        %1950 = vst [vmem:[%s161 + $0x198] sm:$0xff] %v1662
        %1951 = vst [vmem:[%s161 + $0x1a0] sm:$0xff] %v1663
        %1952 = vst [vmem:[%s161 + $0x1a8] sm:$0xff] %v1664
        %1953 = vst [vmem:[%s161 + $0x1b0] sm:$0xff] %v1665
        %1954 = vst [vmem:[%s161 + $0x1b8] sm:$0xff] %v1666
        %1955 = vst [vmem:[%s161 + $0x1c0] sm:$0xff] %v1667
        %1956 = vst [vmem:[%s161 + $0x1c8] sm:$0xff] %v1668
        %1957 = vst [vmem:[%s161 + $0x1d0] sm:$0xff] %v1669
        %1958 = vst [vmem:[%s161 + $0x1d8] sm:$0xff] %v1670
        %1959 = vst [vmem:[%s161 + $0x1e0] sm:$0xff] %v1671
        %1960 = vst [vmem:[%s161 + $0x1e8] sm:$0xff] %v1672
        %1961 = vst [vmem:[%s161 + $0x1f0] sm:$0xff] %v1673
        %1962 = vst [vmem:[%s161 + $0x1f8] sm:$0xff] %v1674
        %1963 = vst [vmem:[%s161 + $0x200] sm:$0xff] %v1675
        %1964 = vst [vmem:[%s161 + $0x208] sm:$0xff] %v1676
        %1965 = vst [vmem:[%s161 + $0x210] sm:$0xff] %v1677
        %1966 = vst [vmem:[%s161 + $0x218] sm:$0xff] %v1678
        %1967 = vst [vmem:[%s161 + $0x220] sm:$0xff] %v1679
        %1968 = vst [vmem:[%s161 + $0x228] sm:$0xff] %v1680
        %1969 = vst [vmem:[%s161 + $0x230] sm:$0xff] %v1681
        %1970 = vst [vmem:[%s161 + $0x238] sm:$0xff] %v1682
        %1971 = vst [vmem:[%s161 + $0x240] sm:$0xff] %v1683
        %1972 = vst [vmem:[%s161 + $0x248] sm:$0xff] %v1684
        %1973 = vst [vmem:[%s161 + $0x250] sm:$0xff] %v1685
        %1974 = vst [vmem:[%s161 + $0x258] sm:$0xff] %v1686
        %1975 = vst [vmem:[%s161 + $0x260] sm:$0xff] %v1687
        %1976 = vst [vmem:[%s161 + $0x268] sm:$0xff] %v1688
        %1977 = vst [vmem:[%s161 + $0x270] sm:$0xff] %v1689
        %1978 = vst [vmem:[%s161 + $0x278] sm:$0xff] %v1690
        %1979 = vst [vmem:[%s161 + $0x280] sm:$0xff] %v1691
        %1980 = vst [vmem:[%s161 + $0x288] sm:$0xff] %v1692
        %1981 = vst [vmem:[%s161 + $0x290] sm:$0xff] %v1693
        %1982 = vst [vmem:[%s161 + $0x298] sm:$0xff] %v1694
        %1983 = vst [vmem:[%s161 + $0x2a0] sm:$0xff] %v1695
        %1984 = vst [vmem:[%s161 + $0x2a8] sm:$0xff] %v1696
        %1985 = vst [vmem:[%s161 + $0x2b0] sm:$0xff] %v1697
        %1986 = vst [vmem:[%s161 + $0x2b8] sm:$0xff] %v1698
        %1987 = vst [vmem:[%s161 + $0x2c0] sm:$0xff] %v1699
        %1988 = vst [vmem:[%s161 + $0x2c8] sm:$0xff] %v1700
        %1989 = vst [vmem:[%s161 + $0x2d0] sm:$0xff] %v1701
        %1990 = vst [vmem:[%s161 + $0x2d8] sm:$0xff] %v1702
        %1991 = vst [vmem:[%s161 + $0x2e0] sm:$0xff] %v1703
        %1992 = vst [vmem:[%s161 + $0x2e8] sm:$0xff] %v1704
        %1993 = vst [vmem:[%s161 + $0x2f0] sm:$0xff] %v1705
        %1994 = vst [vmem:[%s161 + $0x2f8] sm:$0xff] %v1706
        %1995 = vst [vmem:[%s161 + $0x300] sm:$0xff] %v1707
        %1996 = vst [vmem:[%s161 + $0x308] sm:$0xff] %v1708
        %1997 = vst [vmem:[%s161 + $0x310] sm:$0xff] %v1709
        %1998 = vst [vmem:[%s161 + $0x318] sm:$0xff] %v1710
        %1999 = vst [vmem:[%s161 + $0x320] sm:$0xff] %v1711
        %2000 = vst [vmem:[%s161 + $0x328] sm:$0xff] %v1712
        %2001 = vst [vmem:[%s161 + $0x330] sm:$0xff] %v1713
        %2002 = vst [vmem:[%s161 + $0x338] sm:$0xff] %v1714
        %2003 = vst [vmem:[%s161 + $0x340] sm:$0xff] %v1715
        %2004 = vst [vmem:[%s161 + $0x348] sm:$0xff] %v1716
        %2005 = vst [vmem:[%s161 + $0x350] sm:$0xff] %v1717
        %2006 = vst [vmem:[%s161 + $0x358] sm:$0xff] %v1718
        %2007 = vst [vmem:[%s161 + $0x360] sm:$0xff] %v1719
        %2008 = vst [vmem:[%s161 + $0x368] sm:$0xff] %v1720
        %2009 = vst [vmem:[%s161 + $0x370] sm:$0xff] %v1721
        %2010 = vst [vmem:[%s161 + $0x378] sm:$0xff] %v1722
        %2011 = vst [vmem:[%s161 + $0x380] sm:$0xff] %v1723
        %2012 = vst [vmem:[%s161 + $0x388] sm:$0xff] %v1724
        %2013 = vst [vmem:[%s161 + $0x390] sm:$0xff] %v1725
        %2014 = vst [vmem:[%s161 + $0x398] sm:$0xff] %v1726
        %2015 = vst [vmem:[%s161 + $0x3a0] sm:$0xff] %v1727
        %2016 = vst [vmem:[%s161 + $0x3a8] sm:$0xff] %v1728
        %2017 = vst [vmem:[%s161 + $0x3b0] sm:$0xff] %v1729
        %2018 = vst [vmem:[%s161 + $0x3b8] sm:$0xff] %v1730
        %2019 = vst [vmem:[%s161 + $0x3c0] sm:$0xff] %v1731
        %2020 = vst [vmem:[%s161 + $0x3c8] sm:$0xff] %v1732
        %2021 = vst [vmem:[%s161 + $0x3d0] sm:$0xff] %v1733
        %2022 = vst [vmem:[%s161 + $0x3d8] sm:$0xff] %v1734
        %2023 = vst [vmem:[%s161 + $0x3e0] sm:$0xff] %v1735
        %2024 = vst [vmem:[%s161 + $0x3e8] sm:$0xff] %v1736
        %2025 = vst [vmem:[%s161 + $0x3f0] sm:$0xff] %v1737
        %2026 = vst [vmem:[%s161 + $0x3f8] sm:$0xff] %v1738
        %2027 = vst [vmem:[%s161 + $0x400] sm:$0xff] %v1739
        %2028 = vst [vmem:[%s161 + $0x408] sm:$0xff] %v1740
        %2029 = vst [vmem:[%s161 + $0x410] sm:$0xff] %v1741
        %2030 = vst [vmem:[%s161 + $0x418] sm:$0xff] %v1742
        %2031 = vst [vmem:[%s161 + $0x420] sm:$0xff] %v1743
        %2032 = vst [vmem:[%s161 + $0x428] sm:$0xff] %v1744
        %2033 = vst [vmem:[%s161 + $0x430] sm:$0xff] %v1745
        %2034 = vst [vmem:[%s161 + $0x438] sm:$0xff] %v1746
        %2035 = vst [vmem:[%s161 + $0x440] sm:$0xff] %v1747
        %2036 = vst [vmem:[%s161 + $0x448] sm:$0xff] %v1748
        %2037 = vst [vmem:[%s161 + $0x450] sm:$0xff] %v1749
        %2038 = vst [vmem:[%s161 + $0x458] sm:$0xff] %v1750
        %2039 = vst [vmem:[%s161 + $0x460] sm:$0xff] %v1751
        %2040 = vst [vmem:[%s161 + $0x468] sm:$0xff] %v1752
        %2041 = vst [vmem:[%s161 + $0x470] sm:$0xff] %v1753
        %2042 = vst [vmem:[%s161 + $0x478] sm:$0xff] %v1754
        %2043 = vst [vmem:[%s161 + $0x480] sm:$0xff] %v1755
        %2044 = vst [vmem:[%s161 + $0x488] sm:$0xff] %v1756
        %2045 = vst [vmem:[%s161 + $0x490] sm:$0xff] %v1757
        %2046 = vst [vmem:[%s161 + $0x498] sm:$0xff] %v1758
        %2047 = vst [vmem:[%s161 + $0x4a0] sm:$0xff] %v1759
        %2048 = vst [vmem:[%s161 + $0x4a8] sm:$0xff] %v1760
        %2049 = vst [vmem:[%s161 + $0x4b0] sm:$0xff] %v1761
        %2050 = vst [vmem:[%s161 + $0x4b8] sm:$0xff] %v1762
        %2051 = vst [vmem:[%s161 + $0x4c0] sm:$0xff] %v1763
        %2052 = vst [vmem:[%s161 + $0x4c8] sm:$0xff] %v1764
        %2053 = vst [vmem:[%s161 + $0x4d0] sm:$0xff] %v1765
        %2054 = vst [vmem:[%s161 + $0x4d8] sm:$0xff] %v1766
        %2055 = vst [vmem:[%s161 + $0x4e0] sm:$0xff] %v1767
        %2056 = vst [vmem:[%s161 + $0x4e8] sm:$0xff] %v1768
        %2057 = vst [vmem:[%s161 + $0x4f0] sm:$0xff] %v1769
        %2058 = vst [vmem:[%s161 + $0x4f8] sm:$0xff] %v1770
        %2059 = vst [vmem:[%s161 + $0x500] sm:$0xff] %v1771
        %2060 = vst [vmem:[%s161 + $0x508] sm:$0xff] %v1772
        %2061 = vst [vmem:[%s161 + $0x510] sm:$0xff] %v1773
        %2062 = vst [vmem:[%s161 + $0x518] sm:$0xff] %v1774
        %2063 = vst [vmem:[%s161 + $0x520] sm:$0xff] %v1775
        %2064 = vst [vmem:[%s161 + $0x528] sm:$0xff] %v1776
        %2065 = vst [vmem:[%s161 + $0x530] sm:$0xff] %v1777
        %2066 = vst [vmem:[%s161 + $0x538] sm:$0xff] %v1778
        %2067 = vst [vmem:[%s161 + $0x540] sm:$0xff] %v1779
        %2068 = vst [vmem:[%s161 + $0x548] sm:$0xff] %v1780
        %2069 = vst [vmem:[%s161 + $0x550] sm:$0xff] %v1781
        %2070 = vst [vmem:[%s161 + $0x558] sm:$0xff] %v1782
        %2071 = vst [vmem:[%s161 + $0x560] sm:$0xff] %v1783
        %2072 = vst [vmem:[%s161 + $0x568] sm:$0xff] %v1784
        %2073 = vst [vmem:[%s161 + $0x570] sm:$0xff] %v1785
        %2074 = vst [vmem:[%s161 + $0x578] sm:$0xff] %v1786
        %2075 = vst [vmem:[%s161 + $0x580] sm:$0xff] %v1787
        %2076 = vst [vmem:[%s161 + $0x588] sm:$0xff] %v1788
        %2077 = vst [vmem:[%s161 + $0x590] sm:$0xff] %v1789
        %2078 = vst [vmem:[%s161 + $0x598] sm:$0xff] %v1790
        %2079 = vst [vmem:[%s161 + $0x5a0] sm:$0xff] %v1791
        %2080 = vst [vmem:[%s161 + $0x5a8] sm:$0xff] %v1792
        %2081 = vst [vmem:[%s161 + $0x5b0] sm:$0xff] %v1793
        %2082 = vst [vmem:[%s161 + $0x5b8] sm:$0xff] %v1794
        %2083 = vst [vmem:[%s161 + $0x5c0] sm:$0xff] %v1795
        %2084 = vst [vmem:[%s161 + $0x5c8] sm:$0xff] %v1796
        %2085 = vst [vmem:[%s161 + $0x5d0] sm:$0xff] %v1797
        %2086 = vst [vmem:[%s161 + $0x5d8] sm:$0xff] %v1798
        %2087 = vst [vmem:[%s161 + $0x5e0] sm:$0xff] %v1799
        %2088 = vst [vmem:[%s161 + $0x5e8] sm:$0xff] %v1800
        %2089 = vst [vmem:[%s161 + $0x5f0] sm:$0xff] %v1801
        %2090 = vst [vmem:[%s161 + $0x5f8] sm:$0xff] %v1802
        %2091 = vst [vmem:[%s161 + $0x600] sm:$0xff] %v1803
        %2092 = vst [vmem:[%s161 + $0x608] sm:$0xff] %v1804
        %2093 = vst [vmem:[%s161 + $0x610] sm:$0xff] %v1805
        %2094 = vst [vmem:[%s161 + $0x618] sm:$0xff] %v1806
        %2095 = vst [vmem:[%s161 + $0x620] sm:$0xff] %v1807
        %2096 = vst [vmem:[%s161 + $0x628] sm:$0xff] %v1808
        %2097 = vst [vmem:[%s161 + $0x630] sm:$0xff] %v1809
        %2098 = vst [vmem:[%s161 + $0x638] sm:$0xff] %v1810
        %2099 = vst [vmem:[%s161 + $0x640] sm:$0xff] %v1811
        %2100 = vst [vmem:[%s161 + $0x648] sm:$0xff] %v1812
        %2101 = vst [vmem:[%s161 + $0x650] sm:$0xff] %v1813
        %2102 = vst [vmem:[%s161 + $0x658] sm:$0xff] %v1814
        %2103 = vst [vmem:[%s161 + $0x660] sm:$0xff] %v1815
        %2104 = vst [vmem:[%s161 + $0x668] sm:$0xff] %v1816
        %2105 = vst [vmem:[%s161 + $0x670] sm:$0xff] %v1817
        %2106 = vst [vmem:[%s161 + $0x678] sm:$0xff] %v1818
        %2107 = vst [vmem:[%s161 + $0x680] sm:$0xff] %v1819
        %2108 = vst [vmem:[%s161 + $0x688] sm:$0xff] %v1820
        %2109 = vst [vmem:[%s161 + $0x690] sm:$0xff] %v1821
        %2110 = vst [vmem:[%s161 + $0x698] sm:$0xff] %v1822
        %2111 = vst [vmem:[%s161 + $0x6a0] sm:$0xff] %v1823
        %2112 = vst [vmem:[%s161 + $0x6a8] sm:$0xff] %v1824
        %2113 = vst [vmem:[%s161 + $0x6b0] sm:$0xff] %v1825
        %2114 = vst [vmem:[%s161 + $0x6b8] sm:$0xff] %v1826
        %2115 = vst [vmem:[%s161 + $0x6c0] sm:$0xff] %v1827
        %2116 = vst [vmem:[%s161 + $0x6c8] sm:$0xff] %v1828
        %2117 = vst [vmem:[%s161 + $0x6d0] sm:$0xff] %v1829
        %2118 = vst [vmem:[%s161 + $0x6d8] sm:$0xff] %v1830
        %2119 = vst [vmem:[%s161 + $0x6e0] sm:$0xff] %v1831
        %2120 = vst [vmem:[%s161 + $0x6e8] sm:$0xff] %v1832
        %2121 = vst [vmem:[%s161 + $0x6f0] sm:$0xff] %v1833
        %2122 = vst [vmem:[%s161 + $0x6f8] sm:$0xff] %v1834
        %2123 = vst [vmem:[%s161 + $0x700] sm:$0xff] %v1835
        %2124 = vst [vmem:[%s161 + $0x708] sm:$0xff] %v1836
        %2125 = vst [vmem:[%s161 + $0x710] sm:$0xff] %v1837
        %2126 = vst [vmem:[%s161 + $0x718] sm:$0xff] %v1838
        %2127 = vst [vmem:[%s161 + $0x720] sm:$0xff] %v1839
        %2128 = vst [vmem:[%s161 + $0x728] sm:$0xff] %v1840
        %2129 = vst [vmem:[%s161 + $0x730] sm:$0xff] %v1841
        %2130 = vst [vmem:[%s161 + $0x738] sm:$0xff] %v1842
        %2131 = vst [vmem:[%s161 + $0x740] sm:$0xff] %v1843
        %2132 = vst [vmem:[%s161 + $0x748] sm:$0xff] %v1844
        %2133 = vst [vmem:[%s161 + $0x750] sm:$0xff] %v1845
        %2134 = vst [vmem:[%s161 + $0x758] sm:$0xff] %v1846
        %2135 = vst [vmem:[%s161 + $0x760] sm:$0xff] %v1847
        %2136 = vst [vmem:[%s161 + $0x768] sm:$0xff] %v1848
        %2137 = vst [vmem:[%s161 + $0x770] sm:$0xff] %v1849
        %2138 = vst [vmem:[%s161 + $0x778] sm:$0xff] %v1850
        %2139 = vst [vmem:[%s161 + $0x780] sm:$0xff] %v1851
        %2140 = vst [vmem:[%s161 + $0x788] sm:$0xff] %v1852
        %2141 = vst [vmem:[%s161 + $0x790] sm:$0xff] %v1853
        %2142 = vst [vmem:[%s161 + $0x798] sm:$0xff] %v1854
        %2143 = vst [vmem:[%s161 + $0x7a0] sm:$0xff] %v1855
        %2144 = vst [vmem:[%s161 + $0x7a8] sm:$0xff] %v1856
        %2145 = vst [vmem:[%s161 + $0x7b0] sm:$0xff] %v1857
        %2146 = vst [vmem:[%s161 + $0x7b8] sm:$0xff] %v1858
        %2147 = vst [vmem:[%s161 + $0x7c0] sm:$0xff] %v1859
        %2148 = vst [vmem:[%s161 + $0x7c8] sm:$0xff] %v1860
        %2149 = vst [vmem:[%s161 + $0x7d0] sm:$0xff] %v1861
        %2150 = vst [vmem:[%s161 + $0x7d8] sm:$0xff] %v1862
        %2151 = vst [vmem:[%s161 + $0x7e0] sm:$0xff] %v1863
        %2152 = vst [vmem:[%s161 + $0x7e8] sm:$0xff] %v1864
        %2153 = vst [vmem:[%s161 + $0x7f0] sm:$0xff] %v1865
        %2154 = vst [vmem:[%s161 + $0x7f8] sm:$0xff] %v1866
        %2155 = vst [vmem:[%s161 + $0x800] sm:$0xff] %v1867
        %2156 = vst [vmem:[%s161 + $0x808] sm:$0xff] %v1868
        %2157 = vst [vmem:[%s161 + $0x810] sm:$0xff] %v1869
        %2158 = vst [vmem:[%s161 + $0x818] sm:$0xff] %v1870
        %2159 = vst [vmem:[%s161 + $0x820] sm:$0xff] %v1871
        %2160 = vst [vmem:[%s161 + $0x828] sm:$0xff] %v1872
        %2161 = vst [vmem:[%s161 + $0x830] sm:$0xff] %v1873
        %2162 = vst [vmem:[%s161 + $0x838] sm:$0xff] %v1874
        %2163 = vst [vmem:[%s161 + $0x840] sm:$0xff] %v1875
        %2164 = vst [vmem:[%s161 + $0x848] sm:$0xff] %v1876
        %2165 = vst [vmem:[%s161 + $0x850] sm:$0xff] %v1877
        %2166 = vst [vmem:[%s161 + $0x858] sm:$0xff] %v1878
        %2167 = vst [vmem:[%s161 + $0x860] sm:$0xff] %v1879
        %2168 = vst [vmem:[%s161 + $0x868] sm:$0xff] %v1880
        %2169 = vst [vmem:[%s161 + $0x870] sm:$0xff] %v1881
        %2170 = vst [vmem:[%s161 + $0x878] sm:$0xff] %v1882
        %2171 = vst [vmem:[%s161 + $0x880] sm:$0xff] %v1883
        %2172 = vst [vmem:[%s161 + $0x888] sm:$0xff] %v1884
        %2173 = vst [vmem:[%s161 + $0x890] sm:$0xff] %v1885
        %2174 = vst [vmem:[%s161 + $0x898] sm:$0xff] %v1886
        %2175 = vst [vmem:[%s161 + $0x8a0] sm:$0xff] %v1887
        %2176 = vst [vmem:[%s161 + $0x8a8] sm:$0xff] %v1888
        %2177 = vst [vmem:[%s161 + $0x8b0] sm:$0xff] %v1889
        %2178 = vst [vmem:[%s161 + $0x8b8] sm:$0xff] %v1890
        %2179 = vst [vmem:[%s161 + $0x8c0] sm:$0xff] %v1891
        %2180 = vst [vmem:[%s161 + $0x8c8] sm:$0xff] %v1892
        %2181 = vst [vmem:[%s161 + $0x8d0] sm:$0xff] %v1893
        %2182 = vst [vmem:[%s161 + $0x8d8] sm:$0xff] %v1894
        %2183 = vst [vmem:[%s161 + $0x8e0] sm:$0xff] %v1895
        %2184 = vst [vmem:[%s161 + $0x8e8] sm:$0xff] %v1896
        %2185 = vst [vmem:[%s161 + $0x8f0] sm:$0xff] %v1897
        %2186 = vst [vmem:[%s161 + $0x8f8] sm:$0xff] %v1898
        %s2187 = sand.u32 %s74, 1
        %s2188 = scalar_lea.sflag [#allocation4], %s2187
        %s2189 = sand.u32 %s74, 1
        %s2190 = smul.addr %s2189, 2304
        %s2191 = scalar_lea.vmem [#allocation5], %s2190
        // Predicated region
        $region33: #{tpu_custom_call.1} parent=27 // pred_check
          %p2192 = pneg %p84
        $region34: #{tpu_custom_call.1} parent=27 // pred_check_branch
          %2194 = sbr.rel (%p2192) target = $region36
        $region35: #{tpu_custom_call.1} parent=27 // pred_region
          %s2195 = smul.u32 12, %s19
          %s2197 = ssub.s32 36864, 36864
          %2198 = vsyncadd %s2188, %s2197
          %s2199 = smul.addr %s2195, 128
          %s2200 = scalar_lea.hbm %s2, %s2199
          %s2201 = sshll.u32 %s2191, 4
          %s2202 = int_to_ptr.vmem [resolvable:$true] %s2201
          %2207 = dma.vmem_to_hbm [thread:$0]  %s2202, 36864, %s2200, %s2188, 1536, 3072, 96
        $region36: #{tpu_custom_call.1} parent=27 // pred_fallthru
          _
      $region28: #{tpu_custom_call.1} parent=5 // pred_fallthru
        _
      %p2208 = scmp.le.s32.totalorder 2, %s14
      // Predicated region
      $region37: #{tpu_custom_call.1} parent=5 // pred_check
        %p2209 = pneg %p2208
      $region38: #{tpu_custom_call.1} parent=5 // pred_check_branch
        %2211 = sbr.rel (%p2209) target = $region40
      $region39: #{tpu_custom_call.1} parent=5 // pred_region
        %s2212 = ssub.s32 %s14, 2
        // Predicated region
        $region41: #{tpu_custom_call.1} parent=39 // pred_check
          %p2213 = pneg %p90
        $region42: #{tpu_custom_call.1} parent=39 // pred_check_branch
          %2215 = sbr.rel (%p2213) target = $region44
        $region43: #{tpu_custom_call.1} parent=39 // pred_region
          %s2216 = sand.u32 %s75, 1
          %s2217 = scalar_lea.sflag [#allocation4], %s2216
          %s2218 = sand.u32 %s75, 1
          %s2219 = smul.addr %s2218, 2304
          %s2220 = scalar_lea.vmem [#allocation5], %s2219
          %2221 = dma.done %s2217, 36864
        $region44: #{tpu_custom_call.1} parent=39 // pred_fallthru
          _
      $region40: #{tpu_custom_call.1} parent=5 // pred_fallthru
        _
    $region6: #{tpu_custom_call.1} parent=1 // loop_footer
      %s18 = sadd.s32 1, %s14
    $region7: #{tpu_custom_call.1} parent=1 // loop_footer_branch
      %13 = sbr.rel target = $region3
    $region8: #{tpu_custom_call.1} parent=1 // loop_exit
      _
    %2222 = vsyncpa [#allocation3], 1
    %s2223 = scalar_lea.sflag [#allocation3], 1
    %2224 = vsyncpa %s2223, 1
    %2225 = vsyncpa [#allocation4], 1
    %s2226 = scalar_lea.sflag [#allocation4], 1
    %2227 = vsyncpa %s2226, 1

</llo_original>
